<compile_context>
chip_gen: v6e
topology: v6e:2x2x1
jax: 0.10.0
libtpu: 0.0.40
codegen_flags: <defaults>
</compile_context>

<pallas_src>
import jax
import jax.numpy as jnp
from jax.experimental import pallas as pl
from jax.experimental.pallas import tpu as pltpu


def _crnn_fused_kernel(cols_ref, w_ref, b_ref, out_ref):
    # cols_ref: (rows_blk, K*K*(Cin+Ch))  im2col activations (x ++ x_iter)
    # w_ref   : (K*K*(Cin+Ch), Cpad)      fused conv weights, lane-padded
    # b_ref   : (1, Cpad)                 bi + bit + bh (h2h on zeros == bias)
    # out_ref : (rows_blk, Cpad)          lane-dense output slab
    acc = jnp.dot(cols_ref[...], w_ref[...], preferred_element_type=jnp.float32)
    acc = acc + b_ref[...].astype(jnp.float32)
    # nn.LeakyReLU default negative_slope = 0.01
    acc = jnp.where(acc >= 0, acc, 0.01 * acc)
    out_ref[...] = acc.astype(out_ref.dtype)


def _pick_grid(rows, row_bytes, target_block_bytes=2 << 20):
    """Smallest grid_n >= 2 whose blocks divide `rows`, are sublane-aligned and
    keep the cols block under ~target_block_bytes. Falls back to a single full
    block (always legal: block == full array dims)."""
    want = max(2, pl.cdiv(rows * row_bytes, target_block_bytes))
    for g in range(want, rows + 1):
        if rows % g == 0 and (rows // g) % 8 == 0:
            return g
    return 1


def crnn_layer_forward(x, x_iter, params, hidden_size, kernel_size,
                       compute_dtype=None):
    """x: (nt, nb, nc, nx, ny);  x_iter: (nt, nb, hidden, nx, ny)."""
    nt, nb, nc, nx, ny = x.shape
    ksz = kernel_size
    pad = ksz // 2

    # module: input.permute(1,0,2,3,4)[0] -> batch index 0; conv "batch" = nt.
    xi = x[:, 0]                                    # (nt, nc, nx, ny)
    iti = x_iter[:, 0]                              # (nt, Ch, nx, ny)

    # h2h path dropped: init_hidden == zeros, so h2h(hidden) == bh (in bias).

    # --- im2col (plain JAX glue) -------------------------------------------
    cin_tot = nc + hidden_size
    feat = jnp.concatenate([xi, iti], axis=1)               # (nt, Cin+Ch, H, W)
    feat = jnp.transpose(feat, (0, 2, 3, 1))                # NHWC
    feat = jnp.pad(feat, ((0, 0), (pad, pad), (pad, pad), (0, 0)))
    taps = [feat[:, kh:kh + nx, kw:kw + ny, :]
            for kh in range(ksz) for kw in range(ksz)]      # K*K x (nt,H,W,Cin+Ch)
    cols = jnp.concatenate(taps, axis=-1)                   # (nt,H,W,K*K*(Cin+Ch))
    kdim = ksz * ksz * cin_tot
    rows = nt * nx * ny
    cols = cols.reshape(rows, kdim)

    # --- fused, lane-padded weights / bias ---------------------------------
    ch_pad = max(128, -(-hidden_size // 128) * 128)
    wi_t = jnp.transpose(params["wi"], (2, 3, 1, 0))        # (K,K,nc,Ch)
    wit_t = jnp.transpose(params["wit"], (2, 3, 1, 0))      # (K,K,Ch,Ch)
    w_mat = jnp.concatenate([wi_t, wit_t], axis=2).reshape(kdim, hidden_size)
    w_mat = jnp.pad(w_mat, ((0, 0), (0, ch_pad - hidden_size)))
    b_sum = params["bi"] + params["bit"] + params["bh"]     # bh: h2h(0) == bias
    b_mat = jnp.pad(b_sum, (0, ch_pad - hidden_size)).reshape(1, ch_pad)

    if compute_dtype is not None:
        cols = cols.astype(compute_dtype)
        w_mat = w_mat.astype(compute_dtype)

    # --- grid: >=2 parallel blocks when possible (v7x megacore), VMEM-safe --
    grid_n = _pick_grid(rows, kdim * cols.dtype.itemsize)
    rows_blk = rows // grid_n

    out2d = pl.pallas_call(
        _crnn_fused_kernel,
        out_shape=jax.ShapeDtypeStruct((rows, ch_pad), x.dtype),
        grid=(grid_n,),
        in_specs=[
            pl.BlockSpec((rows_blk, kdim), lambda g: (g, 0)),
            pl.BlockSpec((kdim, ch_pad), lambda g: (0, 0)),
            pl.BlockSpec((1, ch_pad), lambda g: (0, 0)),
        ],
        out_specs=pl.BlockSpec((rows_blk, ch_pad), lambda g: (g, 0)),
        compiler_params=pltpu.CompilerParams(
            dimension_semantics=("parallel",)),
    )(cols, w_mat, b_mat)

    # layout plumbing back to PyTorch NCHW
    out = out2d[:, :hidden_size].reshape(nt, nx, ny, hidden_size)
    out = jnp.transpose(out, (0, 3, 1, 2))                  # (nt, Ch, nx, ny)
    if nb == 1:
        out = out.reshape(nt, 1, hidden_size, nx, ny)
    return out


def init_params(key, input_size, hidden_size, ksz, dtype=jnp.float32):
    """Deterministic Conv2d-style init (PyTorch default bound = 1/sqrt(fan_in))."""
    ks = jax.random.split(key, 6)

    def conv_init(kw_, kb_, cin, cout):
        fan_in = cin * ksz * ksz
        bound = 1.0 / float(fan_in) ** 0.5
        w = jax.random.uniform(kw_, (cout, cin, ksz, ksz), dtype, -bound, bound)
        b = jax.random.uniform(kb_, (cout,), dtype, -bound, bound)
        return w, b

    wi, bi = conv_init(ks[0], ks[1], input_size, hidden_size)     # i2h
    wit, bit = conv_init(ks[2], ks[3], hidden_size, hidden_size)  # ih2ih
    wh, bh = conv_init(ks[4], ks[5], hidden_size, hidden_size)    # h2h
    return dict(wi=wi, bi=bi, wit=wit, bit=bit, wh=wh, bh=bh)


def reference_forward(x, x_iter, params, hidden_size, kernel_size):
    """Pure-JAX mirror of the PyTorch module (for correctness check)."""
    nt, nb, nc, nx, ny = x.shape
    pad = kernel_size // 2
    xi = x[:, 0]
    iti = x_iter[:, 0]
    hidden = jnp.zeros((nb, hidden_size, nx, ny), x.dtype)

    def conv(a, w, b):
        o = jax.lax.conv_general_dilated(
            a, w, (1, 1), [(pad, pad), (pad, pad)],
            dimension_numbers=("NCHW", "OIHW", "NCHW"))
        return o + b.reshape(1, -1, 1, 1)

    s = (conv(xi, params["wi"], params["bi"])
         + conv(hidden, params["wh"], params["bh"])
         + conv(iti, params["wit"], params["bit"]))
    out = jnp.where(s >= 0, s, 0.01 * s)
    if nb == 1:
        out = out.reshape(nt, 1, hidden_size, nx, ny)
    return out


if __name__ == "__main__":
    input_size, hidden_size, kernel_size = 4, 32, 3
    nt, nb, nx, ny = 8, 1, 16, 16

    key = jax.random.PRNGKey(0)
    k1, k2, k3 = jax.random.split(key, 3)
    x = jax.random.normal(k1, (nt, nb, input_size, nx, ny), jnp.float32)
    x_iter = jax.random.normal(k2, (nt, nb, hidden_size, nx, ny), jnp.float32)
    params = init_params(k3, input_size, hidden_size, kernel_size)

    out = crnn_layer_forward(x, x_iter, params, hidden_size, kernel_size)
    out = jax.block_until_ready(out)

    ref = reference_forward(x, x_iter, params, hidden_size, kernel_size)
    assert out.shape == (nt, 1, hidden_size, nx, ny), out.shape
    assert jnp.allclose(out, ref, atol=1e-4, rtol=1e-4), "mismatch vs reference"

    print("KERNEL_OK")
</pallas_src>

<mosaic_0001>
module attributes {stable_mosaic.version = 11 : i64} {
  func.func @_crnn_fused_kernel(%arg0: i32, %arg1: memref<1024x324xf32, #tpu.memory_space<vmem>>, %arg2: memref<324x128xf32, #tpu.memory_space<vmem>>, %arg3: memref<1x128xf32, #tpu.memory_space<vmem>>, %arg4: memref<1024x128xf32, #tpu.memory_space<vmem>>) attributes {dimension_semantics = [#tpu.dimension_semantics<parallel>], iteration_bounds = array<i64: 2>, scalar_prefetch = 0 : i64, scratch_operands = 0 : i64, tpu.core_type = #tpu.core_type<tc>, window_params = [{transform_indices = @transform_0, window_bounds = array<i64: 1024, 324>}, {pipeline_mode = #tpu.pipeline_mode<synchronous>, transform_indices = @transform_1, window_bounds = array<i64: 324, 128>}, {pipeline_mode = #tpu.pipeline_mode<synchronous>, transform_indices = @transform_2, window_bounds = array<i64: 1, 128>}, {transform_indices = @transform_3, window_bounds = array<i64: 1024, 128>}]} {
    %c0 = arith.constant 0 : index
    %c0_0 = arith.constant 0 : index
    %0 = vector.load %arg1[%c0, %c0_0] : memref<1024x324xf32, #tpu.memory_space<vmem>>, vector<1024x324xf32>
    %c0_1 = arith.constant 0 : index
    %c0_2 = arith.constant 0 : index
    %1 = vector.load %arg2[%c0_1, %c0_2] : memref<324x128xf32, #tpu.memory_space<vmem>>, vector<324x128xf32>
    %cst = arith.constant dense<0.000000e+00> : vector<1024x128xf32>
    %2 = tpu.matmul %0, %1, %cst {dimension_numbers = #tpu.dot_dimension_numbers<[1], [0], [0], [1], [0, 0, 1, 1], [], []>} : vector<1024x324xf32>, vector<324x128xf32>, vector<1024x128xf32> -> vector<1024x128xf32>
    %c0_3 = arith.constant 0 : index
    %c0_4 = arith.constant 0 : index
    %3 = vector.load %arg3[%c0_3, %c0_4] : memref<1x128xf32, #tpu.memory_space<vmem>>, vector<1x128xf32>
    %4 = vector.broadcast %3 : vector<1x128xf32> to vector<1024x128xf32>
    %5 = arith.addf %2, %4 : vector<1024x128xf32>
    %cst_5 = arith.constant 0.000000e+00 : f32
    %6 = vector.broadcast %cst_5 : f32 to vector<1024x128xf32>
    %7 = arith.cmpf oge, %5, %6 : vector<1024x128xf32>
    %cst_6 = arith.constant 0.00999999977 : f32
    %8 = vector.broadcast %cst_6 : f32 to vector<1024x128xf32>
    %9 = arith.mulf %8, %5 : vector<1024x128xf32>
    %10 = arith.select %7, %5, %9 : vector<1024x128xi1>, vector<1024x128xf32>
    %c0_7 = arith.constant 0 : index
    %c0_8 = arith.constant 0 : index
    %11 = vector.load %arg4[%c0_7, %c0_8] : memref<1024x128xf32, #tpu.memory_space<vmem>>, vector<1024x128xf32>
    tpu.vector_store %arg4[%c0_7, %c0_8], %10 {strides = array<i32>} : memref<1024x128xf32, #tpu.memory_space<vmem>>, vector<1024x128xf32>,
    return
  }
  func.func @transform_0(%arg0: i32) -> (i32, i32) {
    %c0_i32 = arith.constant 0 : i32
    %c0_i32_0 = arith.constant 0 : i32
    return %arg0, %c0_i32 : i32, i32
  }
  func.func @transform_1(%arg0: i32) -> (i32, i32) {
    %c0_i32 = arith.constant 0 : i32
    %c0_i32_0 = arith.constant 0 : i32
    %c0_i32_1 = arith.constant 0 : i32
    return %c0_i32, %c0_i32_0 : i32, i32
  }
  func.func @transform_2(%arg0: i32) -> (i32, i32) {
    %c0_i32 = arith.constant 0 : i32
    %c0_i32_0 = arith.constant 0 : i32
    %c0_i32_1 = arith.constant 0 : i32
    return %c0_i32, %c0_i32_0 : i32, i32
  }
  func.func @transform_3(%arg0: i32) -> (i32, i32) {
    %c0_i32 = arith.constant 0 : i32
    %c0_i32_0 = arith.constant 0 : i32
    return %arg0, %c0_i32 : i32, i32
  }
}

</mosaic_0001>

<llo_original>
// kernel: tpu_custom_call.1
$region0: #{tpu_custom_call.1}
  #allocation0 [shape = 'u32[]', space=smem, size = 0x4, offset = 0x4, fixed_abs, tag = 'smem constant byte address 0x4 - core index']
  #allocation1 [shape = 'u32[144,128]{1,0:T(1,128)}', space=vmem, size = 0x12000, scoped, tag = 'internal scratch']
  %s0 = inlined_call_operand.vmem [shape: f32[2048,324], index: 0, kind: input, shape index: {}]
  %s1 = inlined_call_operand.vmem [shape: f32[324,128], index: 1, kind: input, shape index: {}]
  %s2 = inlined_call_operand.vmem [shape: f32[1,128], index: 2, kind: input, shape index: {}]
  %s3 = inlined_call_operand.hbm [shape: f32[2048,128], index: 3, kind: output, shape index: {}]
  %s4 = sld [smem:[#allocation0]]
  $region45: #{tpu_custom_call.1} parent=0
    _
  %s6 = ssub.s32 1, %s4
  %s7 = scalar_select 0, %s6, %s4
  $region1: #{tpu_custom_call.1} parent=0
    #allocation2 [shape = 'u8[1048576]{0}', space=vmem, size = 0x100000, scoped, tag = 'output window, operand 0']
    #allocation3 [shape = 's32[2]{0}', space=sflag, size = 0x8, scoped, tag = 'scoped memory for tpu_custom_call.1']
    %8 = vsyncpa [#allocation3], 0
    %s9 = scalar_lea.sflag [#allocation3], 1
    %10 = vsyncpa %s9, 0
    loop: start=0, step=1, limit=4
    $region2: #{tpu_custom_call.1} parent=1 // loop_pre_header
      _
    $region3: #{tpu_custom_call.1} parent=1 // loop_header
      %s12 = sphi 0, %s16
      %p13 = scmp.ge.s32.totalorder %s12, 4
      %s22 = sphi 0, %s24
      %s25 = sphi 0, %s22
      %s26 = sphi 0, %s25
      %s42 = sphi 0, %s26
      %s46 = sphi 0, %s46
      %s48 = sphi 0, %s46
      %s49 = sphi 0, %s48
      %s63 = sphi 0, %s49
      %s67 = sphi 0, %s67
      %s69 = sphi 0, %s67
      %s70 = sphi 0, %s69
      %s84 = sphi 0, %s70
      %s90 = sphi 0, %s92
      %s93 = sphi 0, %s90
      %s94 = sphi 0, %s93
      %s110 = sphi 0, %s94
    $region4: #{tpu_custom_call.1} parent=1 // loop_header_branch
      %15 = sbr.rel (%p13) target = $region8
    $region5: #{tpu_custom_call.1} parent=1 // loop_body
      %s17 = ssub.s32 %s12, 1
      %s18 = ssub.s32 %s12, 2
      %s19 = sadd.s32 %s12, 1
      %s20 = ssub.s32 %s12, %s19
      %p21 = scmp.eq.s32.totalorder %s20, 0
      %s23 = sadd.s32 %s22, 1
      %s24 = scalar_select %p21, %s22, %s23
      %p27 = pneg %p21
      %p28 = scmp.eq.s32.totalorder %s12, 1
      %p29 = por %p27, %p28
      %p30 = scmp.ne.s32.totalorder %s22, %s25
      %p31 = scmp.eq.s32.totalorder %s12, 0
      %p32 = por %p30, %p31
      %p33 = scmp.ne.s32.totalorder %s22, %s25
      %p34 = scmp.eq.s32.totalorder %s17, 1
      %p35 = por %p33, %p34
      %p36 = scmp.ne.s32.totalorder %s25, %s26
      %p37 = scmp.eq.s32.totalorder %s17, 0
      %p38 = por %p36, %p37
      %p39 = scmp.ne.s32.totalorder %s25, %s26
      %p40 = scmp.eq.s32.totalorder %s18, 1
      %p41 = por %p39, %p40
      %p43 = scmp.ne.s32.totalorder %s26, %s42
      %p44 = scmp.eq.s32.totalorder %s18, 0
      %p45 = por %p43, %p44
      %s47 = sadd.s32 %s46, 1
      %p50 = scmp.eq.s32.totalorder %s12, 1
      %p51 = scmp.ne.s32.totalorder %s46, %s48
      %p52 = scmp.eq.s32.totalorder %s12, 0
      %p53 = por %p51, %p52
      %p54 = scmp.ne.s32.totalorder %s46, %s48
      %p55 = scmp.eq.s32.totalorder %s17, 1
      %p56 = por %p54, %p55
      %p57 = scmp.ne.s32.totalorder %s48, %s49
      %p58 = scmp.eq.s32.totalorder %s17, 0
      %p59 = por %p57, %p58
      %p60 = scmp.ne.s32.totalorder %s48, %s49
      %p61 = scmp.eq.s32.totalorder %s18, 1
      %p62 = por %p60, %p61
      %p64 = scmp.ne.s32.totalorder %s49, %s63
      %p65 = scmp.eq.s32.totalorder %s18, 0
      %p66 = por %p64, %p65
      %s68 = sadd.s32 %s67, 1
      %p71 = scmp.eq.s32.totalorder %s12, 1
      %p72 = scmp.ne.s32.totalorder %s67, %s69
      %p73 = scmp.eq.s32.totalorder %s12, 0
      %p74 = por %p72, %p73
      %p75 = scmp.ne.s32.totalorder %s67, %s69
      %p76 = scmp.eq.s32.totalorder %s17, 1
      %p77 = por %p75, %p76
      %p78 = scmp.ne.s32.totalorder %s69, %s70
      %p79 = scmp.eq.s32.totalorder %s17, 0
      %p80 = por %p78, %p79
      %p81 = scmp.ne.s32.totalorder %s69, %s70
      %p82 = scmp.eq.s32.totalorder %s18, 1
      %p83 = por %p81, %p82
      %p85 = scmp.ne.s32.totalorder %s70, %s84
      %p86 = scmp.eq.s32.totalorder %s18, 0
      %p87 = por %p85, %p86
      %s88 = ssub.s32 %s12, %s19
      %p89 = scmp.eq.s32.totalorder %s88, 0
      %s91 = sadd.s32 %s90, 1
      %s92 = scalar_select %p89, %s90, %s91
      %p95 = pneg %p89
      %p96 = scmp.eq.s32.totalorder %s12, 1
      %p97 = por %p95, %p96
      %p98 = scmp.ne.s32.totalorder %s90, %s93
      %p99 = scmp.eq.s32.totalorder %s12, 0
      %p100 = por %p98, %p99
      %p101 = scmp.ne.s32.totalorder %s90, %s93
      %p102 = scmp.eq.s32.totalorder %s17, 1
      %p103 = por %p101, %p102
      %p104 = scmp.ne.s32.totalorder %s93, %s94
      %p105 = scmp.eq.s32.totalorder %s17, 0
      %p106 = por %p104, %p105
      %p107 = scmp.ne.s32.totalorder %s93, %s94
      %p108 = scmp.eq.s32.totalorder %s18, 1
      %p109 = por %p107, %p108
      %p111 = scmp.ne.s32.totalorder %s94, %s110
      %p112 = scmp.eq.s32.totalorder %s18, 0
      %p113 = por %p111, %p112
      %p114 = scmp.le.s32.totalorder 1, %s12
      %p115 = scmp.lt.s32.totalorder %s12, 3
      %p116 = pnand %p114, %p115
      %p117 = pneg %p116
      // Predicated region
      $region9: #{tpu_custom_call.1} parent=5 // pred_check
        _
      $region10: #{tpu_custom_call.1} parent=5 // pred_check_branch
        %119 = sbr.rel (%p116) target = $region12
      $region11: #{tpu_custom_call.1} parent=5 // pred_region
        %s120 = ssub.s32 %s12, 1
        // Predicated region
        $region13: #{tpu_custom_call.1} parent=11 // pred_check
          %p121 = pneg %p59
        $region14: #{tpu_custom_call.1} parent=11 // pred_check_branch
          %123 = sbr.rel (%p121) target = $region16
        $region15: #{tpu_custom_call.1} parent=11 // pred_region
          _
        $region16: #{tpu_custom_call.1} parent=11 // pred_fallthru
          _
        // Predicated region
        $region17: #{tpu_custom_call.1} parent=11 // pred_check
          %p124 = pneg %p80
        $region18: #{tpu_custom_call.1} parent=11 // pred_check_branch
          %126 = sbr.rel (%p124) target = $region20
        $region19: #{tpu_custom_call.1} parent=11 // pred_region
          _
        $region20: #{tpu_custom_call.1} parent=11 // pred_fallthru
          _
      $region12: #{tpu_custom_call.1} parent=5 // pred_fallthru
        _
      %p127 = scmp.lt.s32.totalorder %s12, 2
      // Predicated region
      $region21: #{tpu_custom_call.1} parent=5 // pred_check
        %p128 = pneg %p127
      $region22: #{tpu_custom_call.1} parent=5 // pred_check_branch
        %130 = sbr.rel (%p128) target = $region24
      $region23: #{tpu_custom_call.1} parent=5 // pred_region
        // Predicated region
        $region25: #{tpu_custom_call.1} parent=23 // pred_check
          %p131 = pneg %p32
        $region26: #{tpu_custom_call.1} parent=23 // pred_check_branch
          %133 = sbr.rel (%p131) target = $region28
        $region27: #{tpu_custom_call.1} parent=23 // pred_region
          %s134 = smul.u32 128, %s12
          %p135 = scmp.lt.s32.totalorder %s134, 255
          %s136 = scalar_select %p135, %s134, 255
          %s137 = smul.addr %s136, 3
          %s138 = smul.addr %s137, 8
          %s139 = scalar_lea.vmem %s0, %s138
          %s140 = smul.u32 128, %s12
        $region28: #{tpu_custom_call.1} parent=23 // pred_fallthru
          _
      $region24: #{tpu_custom_call.1} parent=5 // pred_fallthru
        _
      %p141 = scmp.le.s32.totalorder 1, %s12
      %p142 = scmp.lt.s32.totalorder %s12, 3
      %p143 = pnand %p141, %p142
      %p144 = pneg %p143
      // Predicated region
      $region29: #{tpu_custom_call.1} parent=5 // pred_check
        _
      $region30: #{tpu_custom_call.1} parent=5 // pred_check_branch
        %146 = sbr.rel (%p143) target = $region32
      $region31: #{tpu_custom_call.1} parent=5 // pred_region
        %s147 = ssub.s32 %s12, 1
        %s148 = smul.u32 128, %s17
        %p149 = scmp.lt.s32.totalorder %s148, 255
        %s150 = scalar_select %p149, %s148, 255
        %s151 = smul.addr %s150, 3
        %s152 = smul.addr %s151, 8
        %s153 = scalar_lea.vmem %s0, %s152
        %p154 = pneg %p38
        %p155 = pneg %p35
        %p156 = pneg %p59
        %p157 = pneg %p56
        %p158 = pneg %p80
        %p159 = pneg %p77
        %p160 = pneg %p106
        %p161 = pneg %p103
        %s162 = sand.u32 %s93, 1
        %s163 = scalar_lea.sflag [#allocation3], %s162
        %s164 = sand.u32 %s93, 1
        %s165 = smul.addr %s164, 1024
        %s166 = scalar_lea.vmem [#allocation2], %s165
        %s167 = smul.u32 128, %s17
        %p168 = scmp.lt.s32.totalorder %s167, 255
        %s169 = scalar_select %p168, %s167, 255
        %s170 = smul.addr %s169, 3
        %s171 = smul.addr %s170, 8
        %s172 = scalar_lea.vmem %s0, %s171
        %s173 = smul.u32 128, %s17
        %s174 = smul.u32 128, %s17
        %v175 = vld [vmem:[%s172] sm:$0xff]
        %v176 = vld [vmem:[%s172 + $0x8] sm:$0xff]
        %v177 = vld [vmem:[%s172 + $0x10] sm:$0xff]
        %v178 = vld [vmem:[%s172 + $0x18] sm:$0xff]
        %v179 = vld [vmem:[%s172 + $0x20] sm:$0xff]
        %v180 = vld [vmem:[%s172 + $0x28] sm:$0xff]
        %v181 = vld [vmem:[%s172 + $0x30] sm:$0xff]
        %v182 = vld [vmem:[%s172 + $0x38] sm:$0xff]
        %v183 = vld [vmem:[%s172 + $0x40] sm:$0xff]
        %v184 = vld [vmem:[%s172 + $0x48] sm:$0xff]
        %v185 = vld [vmem:[%s172 + $0x50] sm:$0xff]
        %v186 = vld [vmem:[%s172 + $0x58] sm:$0xff]
        %v187 = vld [vmem:[%s172 + $0x60] sm:$0xff]
        %v188 = vld [vmem:[%s172 + $0x68] sm:$0xff]
        %v189 = vld [vmem:[%s172 + $0x70] sm:$0xff]
        %v190 = vld [vmem:[%s172 + $0x78] sm:$0xff]
        %v191 = vld [vmem:[%s172 + $0x80] sm:$0xff]
        %v192 = vld [vmem:[%s172 + $0x88] sm:$0xff]
        %v193 = vld [vmem:[%s172 + $0x90] sm:$0xff]
        %v194 = vld [vmem:[%s172 + $0x98] sm:$0xff]
        %v195 = vld [vmem:[%s172 + $0xa0] sm:$0xff]
        %v196 = vld [vmem:[%s172 + $0xa8] sm:$0xff]
        %v197 = vld [vmem:[%s172 + $0xb0] sm:$0xff]
        %v198 = vld [vmem:[%s172 + $0xb8] sm:$0xff]
        %v199 = vld [vmem:[%s172 + $0xc0] sm:$0xff]
        %v200 = vld [vmem:[%s172 + $0xc8] sm:$0xff]
        %v201 = vld [vmem:[%s172 + $0xd0] sm:$0xff]
        %v202 = vld [vmem:[%s172 + $0xd8] sm:$0xff]
        %v203 = vld [vmem:[%s172 + $0xe0] sm:$0xff]
        %v204 = vld [vmem:[%s172 + $0xe8] sm:$0xff]
        %v205 = vld [vmem:[%s172 + $0xf0] sm:$0xff]
        %v206 = vld [vmem:[%s172 + $0xf8] sm:$0xff]
        %v207 = vld [vmem:[%s172 + $0x100] sm:$0xff]
        %v208 = vld [vmem:[%s172 + $0x108] sm:$0xff]
        %v209 = vld [vmem:[%s172 + $0x110] sm:$0xff]
        %v210 = vld [vmem:[%s172 + $0x118] sm:$0xff]
        %v211 = vld [vmem:[%s172 + $0x120] sm:$0xff]
        %v212 = vld [vmem:[%s172 + $0x128] sm:$0xff]
        %v213 = vld [vmem:[%s172 + $0x130] sm:$0xff]
        %v214 = vld [vmem:[%s172 + $0x138] sm:$0xff]
        %v215 = vld [vmem:[%s172 + $0x140] sm:$0xff]
        %v216 = vld [vmem:[%s172 + $0x148] sm:$0xff]
        %v217 = vld [vmem:[%s172 + $0x150] sm:$0xff]
        %v218 = vld [vmem:[%s172 + $0x158] sm:$0xff]
        %v219 = vld [vmem:[%s172 + $0x160] sm:$0xff]
        %v220 = vld [vmem:[%s172 + $0x168] sm:$0xff]
        %v221 = vld [vmem:[%s172 + $0x170] sm:$0xff]
        %v222 = vld [vmem:[%s172 + $0x178] sm:$0xff]
        %v223 = vld [vmem:[%s172 + $0x180] sm:$0xff]
        %v224 = vld [vmem:[%s172 + $0x188] sm:$0xff]
        %v225 = vld [vmem:[%s172 + $0x190] sm:$0xff]
        %v226 = vld [vmem:[%s172 + $0x198] sm:$0xff]
        %v227 = vld [vmem:[%s172 + $0x1a0] sm:$0xff]
        %v228 = vld [vmem:[%s172 + $0x1a8] sm:$0xff]
        %v229 = vld [vmem:[%s172 + $0x1b0] sm:$0xff]
        %v230 = vld [vmem:[%s172 + $0x1b8] sm:$0xff]
        %v231 = vld [vmem:[%s172 + $0x1c0] sm:$0xff]
        %v232 = vld [vmem:[%s172 + $0x1c8] sm:$0xff]
        %v233 = vld [vmem:[%s172 + $0x1d0] sm:$0xff]
        %v234 = vld [vmem:[%s172 + $0x1d8] sm:$0xff]
        %v235 = vld [vmem:[%s172 + $0x1e0] sm:$0xff]
        %v236 = vld [vmem:[%s172 + $0x1e8] sm:$0xff]
        %v237 = vld [vmem:[%s172 + $0x1f0] sm:$0xff]
        %v238 = vld [vmem:[%s172 + $0x1f8] sm:$0xff]
        %v239 = vld [vmem:[%s172 + $0x200] sm:$0xff]
        %v240 = vld [vmem:[%s172 + $0x208] sm:$0xff]
        %v241 = vld [vmem:[%s172 + $0x210] sm:$0xff]
        %v242 = vld [vmem:[%s172 + $0x218] sm:$0xff]
        %v243 = vld [vmem:[%s172 + $0x220] sm:$0xff]
        %v244 = vld [vmem:[%s172 + $0x228] sm:$0xff]
        %v245 = vld [vmem:[%s172 + $0x230] sm:$0xff]
        %v246 = vld [vmem:[%s172 + $0x238] sm:$0xff]
        %v247 = vld [vmem:[%s172 + $0x240] sm:$0xff]
        %v248 = vld [vmem:[%s172 + $0x248] sm:$0xff]
        %v249 = vld [vmem:[%s172 + $0x250] sm:$0xff]
        %v250 = vld [vmem:[%s172 + $0x258] sm:$0xff]
        %v251 = vld [vmem:[%s172 + $0x260] sm:$0xff]
        %v252 = vld [vmem:[%s172 + $0x268] sm:$0xff]
        %v253 = vld [vmem:[%s172 + $0x270] sm:$0xff]
        %v254 = vld [vmem:[%s172 + $0x278] sm:$0xff]
        %v255 = vld [vmem:[%s172 + $0x280] sm:$0xff]
        %v256 = vld [vmem:[%s172 + $0x288] sm:$0xff]
        %v257 = vld [vmem:[%s172 + $0x290] sm:$0xff]
        %v258 = vld [vmem:[%s172 + $0x298] sm:$0xff]
        %v259 = vld [vmem:[%s172 + $0x2a0] sm:$0xff]
        %v260 = vld [vmem:[%s172 + $0x2a8] sm:$0xff]
        %v261 = vld [vmem:[%s172 + $0x2b0] sm:$0xff]
        %v262 = vld [vmem:[%s172 + $0x2b8] sm:$0xff]
        %v263 = vld [vmem:[%s172 + $0x2c0] sm:$0xff]
        %v264 = vld [vmem:[%s172 + $0x2c8] sm:$0xff]
        %v265 = vld [vmem:[%s172 + $0x2d0] sm:$0xff]
        %v266 = vld [vmem:[%s172 + $0x2d8] sm:$0xff]
        %v267 = vld [vmem:[%s172 + $0x2e0] sm:$0xff]
        %v268 = vld [vmem:[%s172 + $0x2e8] sm:$0xff]
        %v269 = vld [vmem:[%s172 + $0x2f0] sm:$0xff]
        %v270 = vld [vmem:[%s172 + $0x2f8] sm:$0xff]
        %v271 = vld [vmem:[%s172 + $0x300] sm:$0xff]
        %v272 = vld [vmem:[%s172 + $0x308] sm:$0xff]
        %v273 = vld [vmem:[%s172 + $0x310] sm:$0xff]
        %v274 = vld [vmem:[%s172 + $0x318] sm:$0xff]
        %v275 = vld [vmem:[%s172 + $0x320] sm:$0xff]
        %v276 = vld [vmem:[%s172 + $0x328] sm:$0xff]
        %v277 = vld [vmem:[%s172 + $0x330] sm:$0xff]
        %v278 = vld [vmem:[%s172 + $0x338] sm:$0xff]
        %v279 = vld [vmem:[%s172 + $0x340] sm:$0xff]
        %v280 = vld [vmem:[%s172 + $0x348] sm:$0xff]
        %v281 = vld [vmem:[%s172 + $0x350] sm:$0xff]
        %v282 = vld [vmem:[%s172 + $0x358] sm:$0xff]
        %v283 = vld [vmem:[%s172 + $0x360] sm:$0xff]
        %v284 = vld [vmem:[%s172 + $0x368] sm:$0xff]
        %v285 = vld [vmem:[%s172 + $0x370] sm:$0xff]
        %v286 = vld [vmem:[%s172 + $0x378] sm:$0xff]
        %v287 = vld [vmem:[%s172 + $0x380] sm:$0xff]
        %v288 = vld [vmem:[%s172 + $0x388] sm:$0xff]
        %v289 = vld [vmem:[%s172 + $0x390] sm:$0xff]
        %v290 = vld [vmem:[%s172 + $0x398] sm:$0xff]
        %v291 = vld [vmem:[%s172 + $0x3a0] sm:$0xff]
        %v292 = vld [vmem:[%s172 + $0x3a8] sm:$0xff]
        %v293 = vld [vmem:[%s172 + $0x3b0] sm:$0xff]
        %v294 = vld [vmem:[%s172 + $0x3b8] sm:$0xff]
        %v295 = vld [vmem:[%s172 + $0x3c0] sm:$0xff]
        %v296 = vld [vmem:[%s172 + $0x3c8] sm:$0xff]
        %v297 = vld [vmem:[%s172 + $0x3d0] sm:$0xff]
        %v298 = vld [vmem:[%s172 + $0x3d8] sm:$0xff]
        %v299 = vld [vmem:[%s172 + $0x3e0] sm:$0xff]
        %v300 = vld [vmem:[%s172 + $0x3e8] sm:$0xff]
        %v301 = vld [vmem:[%s172 + $0x3f0] sm:$0xff]
        %v302 = vld [vmem:[%s172 + $0x3f8] sm:$0xff]
        %v303 = vld [vmem:[%s172 + $0x400] sm:$0xff]
        %v304 = vld [vmem:[%s172 + $0x408] sm:$0xff]
        %v305 = vld [vmem:[%s172 + $0x410] sm:$0xff]
        %v306 = vld [vmem:[%s172 + $0x418] sm:$0xff]
        %v307 = vld [vmem:[%s172 + $0x420] sm:$0xff]
        %v308 = vld [vmem:[%s172 + $0x428] sm:$0xff]
        %v309 = vld [vmem:[%s172 + $0x430] sm:$0xff]
        %v310 = vld [vmem:[%s172 + $0x438] sm:$0xff]
        %v311 = vld [vmem:[%s172 + $0x440] sm:$0xff]
        %v312 = vld [vmem:[%s172 + $0x448] sm:$0xff]
        %v313 = vld [vmem:[%s172 + $0x450] sm:$0xff]
        %v314 = vld [vmem:[%s172 + $0x458] sm:$0xff]
        %v315 = vld [vmem:[%s172 + $0x460] sm:$0xff]
        %v316 = vld [vmem:[%s172 + $0x468] sm:$0xff]
        %v317 = vld [vmem:[%s172 + $0x470] sm:$0xff]
        %v318 = vld [vmem:[%s172 + $0x478] sm:$0xff]
        %v319 = vld [vmem:[%s172 + $0x480] sm:$0xff]
        %v320 = vld [vmem:[%s172 + $0x488] sm:$0xff]
        %v321 = vld [vmem:[%s172 + $0x490] sm:$0xff]
        %v322 = vld [vmem:[%s172 + $0x498] sm:$0xff]
        %v323 = vld [vmem:[%s172 + $0x4a0] sm:$0xff]
        %v324 = vld [vmem:[%s172 + $0x4a8] sm:$0xff]
        %v325 = vld [vmem:[%s172 + $0x4b0] sm:$0xff]
        %v326 = vld [vmem:[%s172 + $0x4b8] sm:$0xff]
        %v327 = vld [vmem:[%s172 + $0x4c0] sm:$0xff]
        %v328 = vld [vmem:[%s172 + $0x4c8] sm:$0xff]
        %v329 = vld [vmem:[%s172 + $0x4d0] sm:$0xff]
        %v330 = vld [vmem:[%s172 + $0x4d8] sm:$0xff]
        %v331 = vld [vmem:[%s172 + $0x4e0] sm:$0xff]
        %v332 = vld [vmem:[%s172 + $0x4e8] sm:$0xff]
        %v333 = vld [vmem:[%s172 + $0x4f0] sm:$0xff]
        %v334 = vld [vmem:[%s172 + $0x4f8] sm:$0xff]
        %v335 = vld [vmem:[%s172 + $0x500] sm:$0xff]
        %v336 = vld [vmem:[%s172 + $0x508] sm:$0xff]
        %v337 = vld [vmem:[%s172 + $0x510] sm:$0xff]
        %v338 = vld [vmem:[%s172 + $0x518] sm:$0xff]
        %v339 = vld [vmem:[%s172 + $0x520] sm:$0xff]
        %v340 = vld [vmem:[%s172 + $0x528] sm:$0xff]
        %v341 = vld [vmem:[%s172 + $0x530] sm:$0xff]
        %v342 = vld [vmem:[%s172 + $0x538] sm:$0xff]
        %v343 = vld [vmem:[%s172 + $0x540] sm:$0xff]
        %v344 = vld [vmem:[%s172 + $0x548] sm:$0xff]
        %v345 = vld [vmem:[%s172 + $0x550] sm:$0xff]
        %v346 = vld [vmem:[%s172 + $0x558] sm:$0xff]
        %v347 = vld [vmem:[%s172 + $0x560] sm:$0xff]
        %v348 = vld [vmem:[%s172 + $0x568] sm:$0xff]
        %v349 = vld [vmem:[%s172 + $0x570] sm:$0xff]
        %v350 = vld [vmem:[%s172 + $0x578] sm:$0xff]
        %v351 = vld [vmem:[%s172 + $0x580] sm:$0xff]
        %v352 = vld [vmem:[%s172 + $0x588] sm:$0xff]
        %v353 = vld [vmem:[%s172 + $0x590] sm:$0xff]
        %v354 = vld [vmem:[%s172 + $0x598] sm:$0xff]
        %v355 = vld [vmem:[%s172 + $0x5a0] sm:$0xff]
        %v356 = vld [vmem:[%s172 + $0x5a8] sm:$0xff]
        %v357 = vld [vmem:[%s172 + $0x5b0] sm:$0xff]
        %v358 = vld [vmem:[%s172 + $0x5b8] sm:$0xff]
        %v359 = vld [vmem:[%s172 + $0x5c0] sm:$0xff]
        %v360 = vld [vmem:[%s172 + $0x5c8] sm:$0xff]
        %v361 = vld [vmem:[%s172 + $0x5d0] sm:$0xff]
        %v362 = vld [vmem:[%s172 + $0x5d8] sm:$0xff]
        %v363 = vld [vmem:[%s172 + $0x5e0] sm:$0xff]
        %v364 = vld [vmem:[%s172 + $0x5e8] sm:$0xff]
        %v365 = vld [vmem:[%s172 + $0x5f0] sm:$0xff]
        %v366 = vld [vmem:[%s172 + $0x5f8] sm:$0xff]
        %v367 = vld [vmem:[%s172 + $0x600] sm:$0xff]
        %v368 = vld [vmem:[%s172 + $0x608] sm:$0xff]
        %v369 = vld [vmem:[%s172 + $0x610] sm:$0xff]
        %v370 = vld [vmem:[%s172 + $0x618] sm:$0xff]
        %v371 = vld [vmem:[%s172 + $0x620] sm:$0xff]
        %v372 = vld [vmem:[%s172 + $0x628] sm:$0xff]
        %v373 = vld [vmem:[%s172 + $0x630] sm:$0xff]
        %v374 = vld [vmem:[%s172 + $0x638] sm:$0xff]
        %v375 = vld [vmem:[%s172 + $0x640] sm:$0xff]
        %v376 = vld [vmem:[%s172 + $0x648] sm:$0xff]
        %v377 = vld [vmem:[%s172 + $0x650] sm:$0xff]
        %v378 = vld [vmem:[%s172 + $0x658] sm:$0xff]
        %v379 = vld [vmem:[%s172 + $0x660] sm:$0xff]
        %v380 = vld [vmem:[%s172 + $0x668] sm:$0xff]
        %v381 = vld [vmem:[%s172 + $0x670] sm:$0xff]
        %v382 = vld [vmem:[%s172 + $0x678] sm:$0xff]
        %v383 = vld [vmem:[%s172 + $0x680] sm:$0xff]
        %v384 = vld [vmem:[%s172 + $0x688] sm:$0xff]
        %v385 = vld [vmem:[%s172 + $0x690] sm:$0xff]
        %v386 = vld [vmem:[%s172 + $0x698] sm:$0xff]
        %v387 = vld [vmem:[%s172 + $0x6a0] sm:$0xff]
        %v388 = vld [vmem:[%s172 + $0x6a8] sm:$0xff]
        %v389 = vld [vmem:[%s172 + $0x6b0] sm:$0xff]
        %v390 = vld [vmem:[%s172 + $0x6b8] sm:$0xff]
        %v391 = vld [vmem:[%s172 + $0x6c0] sm:$0xff]
        %v392 = vld [vmem:[%s172 + $0x6c8] sm:$0xff]
        %v393 = vld [vmem:[%s172 + $0x6d0] sm:$0xff]
        %v394 = vld [vmem:[%s172 + $0x6d8] sm:$0xff]
        %v395 = vld [vmem:[%s172 + $0x6e0] sm:$0xff]
        %v396 = vld [vmem:[%s172 + $0x6e8] sm:$0xff]
        %v397 = vld [vmem:[%s172 + $0x6f0] sm:$0xff]
        %v398 = vld [vmem:[%s172 + $0x6f8] sm:$0xff]
        %v399 = vld [vmem:[%s172 + $0x700] sm:$0xff]
        %v400 = vld [vmem:[%s172 + $0x708] sm:$0xff]
        %v401 = vld [vmem:[%s172 + $0x710] sm:$0xff]
        %v402 = vld [vmem:[%s172 + $0x718] sm:$0xff]
        %v403 = vld [vmem:[%s172 + $0x720] sm:$0xff]
        %v404 = vld [vmem:[%s172 + $0x728] sm:$0xff]
        %v405 = vld [vmem:[%s172 + $0x730] sm:$0xff]
        %v406 = vld [vmem:[%s172 + $0x738] sm:$0xff]
        %v407 = vld [vmem:[%s172 + $0x740] sm:$0xff]
        %v408 = vld [vmem:[%s172 + $0x748] sm:$0xff]
        %v409 = vld [vmem:[%s172 + $0x750] sm:$0xff]
        %v410 = vld [vmem:[%s172 + $0x758] sm:$0xff]
        %v411 = vld [vmem:[%s172 + $0x760] sm:$0xff]
        %v412 = vld [vmem:[%s172 + $0x768] sm:$0xff]
        %v413 = vld [vmem:[%s172 + $0x770] sm:$0xff]
        %v414 = vld [vmem:[%s172 + $0x778] sm:$0xff]
        %v415 = vld [vmem:[%s172 + $0x780] sm:$0xff]
        %v416 = vld [vmem:[%s172 + $0x788] sm:$0xff]
        %v417 = vld [vmem:[%s172 + $0x790] sm:$0xff]
        %v418 = vld [vmem:[%s172 + $0x798] sm:$0xff]
        %v419 = vld [vmem:[%s172 + $0x7a0] sm:$0xff]
        %v420 = vld [vmem:[%s172 + $0x7a8] sm:$0xff]
        %v421 = vld [vmem:[%s172 + $0x7b0] sm:$0xff]
        %v422 = vld [vmem:[%s172 + $0x7b8] sm:$0xff]
        %v423 = vld [vmem:[%s172 + $0x7c0] sm:$0xff]
        %v424 = vld [vmem:[%s172 + $0x7c8] sm:$0xff]
        %v425 = vld [vmem:[%s172 + $0x7d0] sm:$0xff]
        %v426 = vld [vmem:[%s172 + $0x7d8] sm:$0xff]
        %v427 = vld [vmem:[%s172 + $0x7e0] sm:$0xff]
        %v428 = vld [vmem:[%s172 + $0x7e8] sm:$0xff]
        %v429 = vld [vmem:[%s172 + $0x7f0] sm:$0xff]
        %v430 = vld [vmem:[%s172 + $0x7f8] sm:$0xff]
        %v431 = vld [vmem:[%s172 + $0x800] sm:$0xff]
        %v432 = vld [vmem:[%s172 + $0x808] sm:$0xff]
        %v433 = vld [vmem:[%s172 + $0x810] sm:$0xff]
        %v434 = vld [vmem:[%s172 + $0x818] sm:$0xff]
        %v435 = vld [vmem:[%s172 + $0x820] sm:$0xff]
        %v436 = vld [vmem:[%s172 + $0x828] sm:$0xff]
        %v437 = vld [vmem:[%s172 + $0x830] sm:$0xff]
        %v438 = vld [vmem:[%s172 + $0x838] sm:$0xff]
        %v439 = vld [vmem:[%s172 + $0x840] sm:$0xff]
        %v440 = vld [vmem:[%s172 + $0x848] sm:$0xff]
        %v441 = vld [vmem:[%s172 + $0x850] sm:$0xff]
        %v442 = vld [vmem:[%s172 + $0x858] sm:$0xff]
        %v443 = vld [vmem:[%s172 + $0x860] sm:$0xff]
        %v444 = vld [vmem:[%s172 + $0x868] sm:$0xff]
        %v445 = vld [vmem:[%s172 + $0x870] sm:$0xff]
        %v446 = vld [vmem:[%s172 + $0x878] sm:$0xff]
        %v447 = vld [vmem:[%s172 + $0x880] sm:$0xff]
        %v448 = vld [vmem:[%s172 + $0x888] sm:$0xff]
        %v449 = vld [vmem:[%s172 + $0x890] sm:$0xff]
        %v450 = vld [vmem:[%s172 + $0x898] sm:$0xff]
        %v451 = vld [vmem:[%s172 + $0x8a0] sm:$0xff]
        %v452 = vld [vmem:[%s172 + $0x8a8] sm:$0xff]
        %v453 = vld [vmem:[%s172 + $0x8b0] sm:$0xff]
        %v454 = vld [vmem:[%s172 + $0x8b8] sm:$0xff]
        %v455 = vld [vmem:[%s172 + $0x8c0] sm:$0xff]
        %v456 = vld [vmem:[%s172 + $0x8c8] sm:$0xff]
        %v457 = vld [vmem:[%s172 + $0x8d0] sm:$0xff]
        %v458 = vld [vmem:[%s172 + $0x8d8] sm:$0xff]
        %v459 = vld [vmem:[%s172 + $0x8e0] sm:$0xff]
        %v460 = vld [vmem:[%s172 + $0x8e8] sm:$0xff]
        %v461 = vld [vmem:[%s172 + $0x8f0] sm:$0xff]
        %v462 = vld [vmem:[%s172 + $0x8f8] sm:$0xff]
        %v463 = vld [vmem:[%s172 + $0x900] sm:$0xff]
        %v464 = vld [vmem:[%s172 + $0x908] sm:$0xff]
        %v465 = vld [vmem:[%s172 + $0x910] sm:$0xff]
        %v466 = vld [vmem:[%s172 + $0x918] sm:$0xff]
        %v467 = vld [vmem:[%s172 + $0x920] sm:$0xff]
        %v468 = vld [vmem:[%s172 + $0x928] sm:$0xff]
        %v469 = vld [vmem:[%s172 + $0x930] sm:$0xff]
        %v470 = vld [vmem:[%s172 + $0x938] sm:$0xff]
        %v471 = vld [vmem:[%s172 + $0x940] sm:$0xff]
        %v472 = vld [vmem:[%s172 + $0x948] sm:$0xff]
        %v473 = vld [vmem:[%s172 + $0x950] sm:$0xff]
        %v474 = vld [vmem:[%s172 + $0x958] sm:$0xff]
        %v475 = vld [vmem:[%s172 + $0x960] sm:$0xff]
        %v476 = vld [vmem:[%s172 + $0x968] sm:$0xff]
        %v477 = vld [vmem:[%s172 + $0x970] sm:$0xff]
        %v478 = vld [vmem:[%s172 + $0x978] sm:$0xff]
        %v479 = vld [vmem:[%s172 + $0x980] sm:$0xff]
        %v480 = vld [vmem:[%s172 + $0x988] sm:$0xff]
        %v481 = vld [vmem:[%s172 + $0x990] sm:$0xff]
        %v482 = vld [vmem:[%s172 + $0x998] sm:$0xff]
        %v483 = vld [vmem:[%s172 + $0x9a0] sm:$0xff]
        %v484 = vld [vmem:[%s172 + $0x9a8] sm:$0xff]
        %v485 = vld [vmem:[%s172 + $0x9b0] sm:$0xff]
        %v486 = vld [vmem:[%s172 + $0x9b8] sm:$0xff]
        %v487 = vld [vmem:[%s172 + $0x9c0] sm:$0xff]
        %v488 = vld [vmem:[%s172 + $0x9c8] sm:$0xff]
        %v489 = vld [vmem:[%s172 + $0x9d0] sm:$0xff]
        %v490 = vld [vmem:[%s172 + $0x9d8] sm:$0xff]
        %v491 = vld [vmem:[%s172 + $0x9e0] sm:$0xff]
        %v492 = vld [vmem:[%s172 + $0x9e8] sm:$0xff]
        %v493 = vld [vmem:[%s172 + $0x9f0] sm:$0xff]
        %v494 = vld [vmem:[%s172 + $0x9f8] sm:$0xff]
        %v495 = vld [vmem:[%s172 + $0xa00] sm:$0xff]
        %v496 = vld [vmem:[%s172 + $0xa08] sm:$0xff]
        %v497 = vld [vmem:[%s172 + $0xa10] sm:$0xff]
        %v498 = vld [vmem:[%s172 + $0xa18] sm:$0xff]
        %v499 = vld [vmem:[%s172 + $0xa20] sm:$0xff]
        %v500 = vld [vmem:[%s172 + $0xa28] sm:$0xff]
        %v501 = vld [vmem:[%s172 + $0xa30] sm:$0xff]
        %v502 = vld [vmem:[%s172 + $0xa38] sm:$0xff]
        %v503 = vld [vmem:[%s172 + $0xa40] sm:$0xff]
        %v504 = vld [vmem:[%s172 + $0xa48] sm:$0xff]
        %v505 = vld [vmem:[%s172 + $0xa50] sm:$0xff]
        %v506 = vld [vmem:[%s172 + $0xa58] sm:$0xff]
        %v507 = vld [vmem:[%s172 + $0xa60] sm:$0xff]
        %v508 = vld [vmem:[%s172 + $0xa68] sm:$0xff]
        %v509 = vld [vmem:[%s172 + $0xa70] sm:$0xff]
        %v510 = vld [vmem:[%s172 + $0xa78] sm:$0xff]
        %v511 = vld [vmem:[%s172 + $0xa80] sm:$0xff]
        %v512 = vld [vmem:[%s172 + $0xa88] sm:$0xff]
        %v513 = vld [vmem:[%s172 + $0xa90] sm:$0xff]
        %v514 = vld [vmem:[%s172 + $0xa98] sm:$0xff]
        %v515 = vld [vmem:[%s172 + $0xaa0] sm:$0xff]
        %v516 = vld [vmem:[%s172 + $0xaa8] sm:$0xff]
        %v517 = vld [vmem:[%s172 + $0xab0] sm:$0xff]
        %v518 = vld [vmem:[%s172 + $0xab8] sm:$0xff]
        %v519 = vld [vmem:[%s172 + $0xac0] sm:$0xff]
        %v520 = vld [vmem:[%s172 + $0xac8] sm:$0xff]
        %v521 = vld [vmem:[%s172 + $0xad0] sm:$0xff]
        %v522 = vld [vmem:[%s172 + $0xad8] sm:$0xff]
        %v523 = vld [vmem:[%s172 + $0xae0] sm:$0xff]
        %v524 = vld [vmem:[%s172 + $0xae8] sm:$0xff]
        %v525 = vld [vmem:[%s172 + $0xaf0] sm:$0xff]
        %v526 = vld [vmem:[%s172 + $0xaf8] sm:$0xff]
        %v527 = vld [vmem:[%s172 + $0xb00] sm:$0xff]
        %v528 = vld [vmem:[%s172 + $0xb08] sm:$0xff]
        %v529 = vld [vmem:[%s172 + $0xb10] sm:$0xff]
        %v530 = vld [vmem:[%s172 + $0xb18] sm:$0xff]
        %v531 = vld [vmem:[%s172 + $0xb20] sm:$0xff]
        %v532 = vld [vmem:[%s172 + $0xb28] sm:$0xff]
        %v533 = vld [vmem:[%s172 + $0xb30] sm:$0xff]
        %v534 = vld [vmem:[%s172 + $0xb38] sm:$0xff]
        %v535 = vld [vmem:[%s172 + $0xb40] sm:$0xff]
        %v536 = vld [vmem:[%s172 + $0xb48] sm:$0xff]
        %v537 = vld [vmem:[%s172 + $0xb50] sm:$0xff]
        %v538 = vld [vmem:[%s172 + $0xb58] sm:$0xff]
        %v539 = vld [vmem:[%s172 + $0xb60] sm:$0xff]
        %v540 = vld [vmem:[%s172 + $0xb68] sm:$0xff]
        %v541 = vld [vmem:[%s172 + $0xb70] sm:$0xff]
        %v542 = vld [vmem:[%s172 + $0xb78] sm:$0xff]
        %v543 = vld [vmem:[%s172 + $0xb80] sm:$0xff]
        %v544 = vld [vmem:[%s172 + $0xb88] sm:$0xff]
        %v545 = vld [vmem:[%s172 + $0xb90] sm:$0xff]
        %v546 = vld [vmem:[%s172 + $0xb98] sm:$0xff]
        %v547 = vld [vmem:[%s172 + $0xba0] sm:$0xff]
        %v548 = vld [vmem:[%s172 + $0xba8] sm:$0xff]
        %v549 = vld [vmem:[%s172 + $0xbb0] sm:$0xff]
        %v550 = vld [vmem:[%s172 + $0xbb8] sm:$0xff]
        %v551 = vld [vmem:[%s172 + $0xbc0] sm:$0xff]
        %v552 = vld [vmem:[%s172 + $0xbc8] sm:$0xff]
        %v553 = vld [vmem:[%s172 + $0xbd0] sm:$0xff]
        %v554 = vld [vmem:[%s172 + $0xbd8] sm:$0xff]
        %v555 = vld [vmem:[%s172 + $0xbe0] sm:$0xff]
        %v556 = vld [vmem:[%s172 + $0xbe8] sm:$0xff]
        %v557 = vld [vmem:[%s172 + $0xbf0] sm:$0xff]
        %v558 = vld [vmem:[%s172 + $0xbf8] sm:$0xff]
        %v559 = vld [vmem:[%s1] sm:$0xff]
        %v560 = vld [vmem:[%s1 + $0x8] sm:$0xff]
        %v561 = vld [vmem:[%s1 + $0x10] sm:$0xff]
        %v562 = vld [vmem:[%s1 + $0x18] sm:$0xff]
        %v563 = vld [vmem:[%s1 + $0x20] sm:$0xff]
        %v564 = vld [vmem:[%s1 + $0x28] sm:$0xff]
        %v565 = vld [vmem:[%s1 + $0x30] sm:$0xff]
        %v566 = vld [vmem:[%s1 + $0x38] sm:$0xff]
        %v567 = vld [vmem:[%s1 + $0x40] sm:$0xff]
        %v568 = vld [vmem:[%s1 + $0x48] sm:$0xff]
        %v569 = vld [vmem:[%s1 + $0x50] sm:$0xff]
        %v570 = vld [vmem:[%s1 + $0x58] sm:$0xff]
        %v571 = vld [vmem:[%s1 + $0x60] sm:$0xff]
        %v572 = vld [vmem:[%s1 + $0x68] sm:$0xff]
        %v573 = vld [vmem:[%s1 + $0x70] sm:$0xff]
        %v574 = vld [vmem:[%s1 + $0x78] sm:$0xff]
        %v575 = vld [vmem:[%s1 + $0x80] sm:$0xff]
        %v576 = vld [vmem:[%s1 + $0x88] sm:$0xff]
        %v577 = vld [vmem:[%s1 + $0x90] sm:$0xff]
        %v578 = vld [vmem:[%s1 + $0x98] sm:$0xff]
        %v579 = vld [vmem:[%s1 + $0xa0] sm:$0xff]
        %v580 = vld [vmem:[%s1 + $0xa8] sm:$0xff]
        %v581 = vld [vmem:[%s1 + $0xb0] sm:$0xff]
        %v582 = vld [vmem:[%s1 + $0xb8] sm:$0xff]
        %v583 = vld [vmem:[%s1 + $0xc0] sm:$0xff]
        %v584 = vld [vmem:[%s1 + $0xc8] sm:$0xff]
        %v585 = vld [vmem:[%s1 + $0xd0] sm:$0xff]
        %v586 = vld [vmem:[%s1 + $0xd8] sm:$0xff]
        %v587 = vld [vmem:[%s1 + $0xe0] sm:$0xff]
        %v588 = vld [vmem:[%s1 + $0xe8] sm:$0xff]
        %v589 = vld [vmem:[%s1 + $0xf0] sm:$0xff]
        %v590 = vld [vmem:[%s1 + $0xf8] sm:$0xff]
        %v591 = vld [vmem:[%s1 + $0x100] sm:$0xff]
        %v592 = vld [vmem:[%s1 + $0x108] sm:$0xff]
        %v593 = vld [vmem:[%s1 + $0x110] sm:$0xff]
        %v594 = vld [vmem:[%s1 + $0x118] sm:$0xff]
        %v595 = vld [vmem:[%s1 + $0x120] sm:$0xff]
        %v596 = vld [vmem:[%s1 + $0x128] sm:$0xff]
        %v597 = vld [vmem:[%s1 + $0x130] sm:$0xff]
        %v598 = vld [vmem:[%s1 + $0x138] sm:$0xff]
        %v599 = vld [vmem:[%s1 + $0x140] sm:$0xf]
        %v600 = vld [vmem:[%s2] sm:$0x1]
        %v602 = vlaneseq
        %v603 = vshrl.u32 %v602, 7
        %v604 = vsub.s32 0, %v603
        %v605 = vrot.slane %v600, %v604
        %vm607 = vcmask 556032
        %v609 = vsel %vm607, %v177, 0
        %v612 = vsel %vm607, %v180, 0
        %v615 = vsel %vm607, %v183, 0
        %v618 = vsel %vm607, %v186, 0
        %v621 = vsel %vm607, %v189, 0
        %v624 = vsel %vm607, %v192, 0
        %v627 = vsel %vm607, %v195, 0
        %v630 = vsel %vm607, %v198, 0
        %v633 = vsel %vm607, %v201, 0
        %v636 = vsel %vm607, %v204, 0
        %v639 = vsel %vm607, %v207, 0
        %v642 = vsel %vm607, %v210, 0
        %v645 = vsel %vm607, %v213, 0
        %v648 = vsel %vm607, %v216, 0
        %v651 = vsel %vm607, %v219, 0
        %v654 = vsel %vm607, %v222, 0
        %v657 = vsel %vm607, %v225, 0
        %v660 = vsel %vm607, %v228, 0
        %v663 = vsel %vm607, %v231, 0
        %v666 = vsel %vm607, %v234, 0
        %v669 = vsel %vm607, %v237, 0
        %v672 = vsel %vm607, %v240, 0
        %v675 = vsel %vm607, %v243, 0
        %v678 = vsel %vm607, %v246, 0
        %v681 = vsel %vm607, %v249, 0
        %v684 = vsel %vm607, %v252, 0
        %v687 = vsel %vm607, %v255, 0
        %v690 = vsel %vm607, %v258, 0
        %v693 = vsel %vm607, %v261, 0
        %v696 = vsel %vm607, %v264, 0
        %v699 = vsel %vm607, %v267, 0
        %v702 = vsel %vm607, %v270, 0
        %v705 = vsel %vm607, %v273, 0
        %v708 = vsel %vm607, %v276, 0
        %v711 = vsel %vm607, %v279, 0
        %v714 = vsel %vm607, %v282, 0
        %v717 = vsel %vm607, %v285, 0
        %v720 = vsel %vm607, %v288, 0
        %v723 = vsel %vm607, %v291, 0
        %v726 = vsel %vm607, %v294, 0
        %v729 = vsel %vm607, %v297, 0
        %v732 = vsel %vm607, %v300, 0
        %v735 = vsel %vm607, %v303, 0
        %v738 = vsel %vm607, %v306, 0
        %v741 = vsel %vm607, %v309, 0
        %v744 = vsel %vm607, %v312, 0
        %v747 = vsel %vm607, %v315, 0
        %v750 = vsel %vm607, %v318, 0
        %v753 = vsel %vm607, %v321, 0
        %v756 = vsel %vm607, %v324, 0
        %v759 = vsel %vm607, %v327, 0
        %v762 = vsel %vm607, %v330, 0
        %v765 = vsel %vm607, %v333, 0
        %v768 = vsel %vm607, %v336, 0
        %v771 = vsel %vm607, %v339, 0
        %v774 = vsel %vm607, %v342, 0
        %v777 = vsel %vm607, %v345, 0
        %v780 = vsel %vm607, %v348, 0
        %v783 = vsel %vm607, %v351, 0
        %v786 = vsel %vm607, %v354, 0
        %v789 = vsel %vm607, %v357, 0
        %v792 = vsel %vm607, %v360, 0
        %v795 = vsel %vm607, %v363, 0
        %v798 = vsel %vm607, %v366, 0
        %v801 = vsel %vm607, %v369, 0
        %v804 = vsel %vm607, %v372, 0
        %v807 = vsel %vm607, %v375, 0
        %v810 = vsel %vm607, %v378, 0
        %v813 = vsel %vm607, %v381, 0
        %v816 = vsel %vm607, %v384, 0
        %v819 = vsel %vm607, %v387, 0
        %v822 = vsel %vm607, %v390, 0
        %v825 = vsel %vm607, %v393, 0
        %v828 = vsel %vm607, %v396, 0
        %v831 = vsel %vm607, %v399, 0
        %v834 = vsel %vm607, %v402, 0
        %v837 = vsel %vm607, %v405, 0
        %v840 = vsel %vm607, %v408, 0
        %v843 = vsel %vm607, %v411, 0
        %v846 = vsel %vm607, %v414, 0
        %v849 = vsel %vm607, %v417, 0
        %v852 = vsel %vm607, %v420, 0
        %v855 = vsel %vm607, %v423, 0
        %v858 = vsel %vm607, %v426, 0
        %v861 = vsel %vm607, %v429, 0
        %v864 = vsel %vm607, %v432, 0
        %v867 = vsel %vm607, %v435, 0
        %v870 = vsel %vm607, %v438, 0
        %v873 = vsel %vm607, %v441, 0
        %v876 = vsel %vm607, %v444, 0
        %v879 = vsel %vm607, %v447, 0
        %v882 = vsel %vm607, %v450, 0
        %v885 = vsel %vm607, %v453, 0
        %v888 = vsel %vm607, %v456, 0
        %v891 = vsel %vm607, %v459, 0
        %v894 = vsel %vm607, %v462, 0
        %v897 = vsel %vm607, %v465, 0
        %v900 = vsel %vm607, %v468, 0
        %v903 = vsel %vm607, %v471, 0
        %v906 = vsel %vm607, %v474, 0
        %v909 = vsel %vm607, %v477, 0
        %v912 = vsel %vm607, %v480, 0
        %v915 = vsel %vm607, %v483, 0
        %v918 = vsel %vm607, %v486, 0
        %v921 = vsel %vm607, %v489, 0
        %v924 = vsel %vm607, %v492, 0
        %v927 = vsel %vm607, %v495, 0
        %v930 = vsel %vm607, %v498, 0
        %v933 = vsel %vm607, %v501, 0
        %v936 = vsel %vm607, %v504, 0
        %v939 = vsel %vm607, %v507, 0
        %v942 = vsel %vm607, %v510, 0
        %v945 = vsel %vm607, %v513, 0
        %v948 = vsel %vm607, %v516, 0
        %v951 = vsel %vm607, %v519, 0
        %v954 = vsel %vm607, %v522, 0
        %v957 = vsel %vm607, %v525, 0
        %v960 = vsel %vm607, %v528, 0
        %v963 = vsel %vm607, %v531, 0
        %v966 = vsel %vm607, %v534, 0
        %v969 = vsel %vm607, %v537, 0
        %v972 = vsel %vm607, %v540, 0
        %v975 = vsel %vm607, %v543, 0
        %v978 = vsel %vm607, %v546, 0
        %v981 = vsel %vm607, %v549, 0
        %v984 = vsel %vm607, %v552, 0
        %v987 = vsel %vm607, %v555, 0
        %v990 = vsel %vm607, %v558, 0
        %vm992 = vcmask 1043456
        %v994 = vsel %vm992, %v599, 0
        %996 = vmatprep.subr.mxu0 0.0
        %997 = vmatpush1.msra.mxu0 %v574
        %998 = vmatprep.subr.mxu0 0.0
        %999 = vmatpush1.msra.mxu0 %v573
        %1000 = vmatprep.subr.mxu0 0.0
        %1001 = vmatpush1.msra.mxu0 %v572
        %1002 = vmatprep.subr.mxu0 0.0
        %1003 = vmatpush1.msra.mxu0 %v571
        %1004 = vmatprep.subr.mxu0 0.0
        %1005 = vmatpush1.msra.mxu0 %v570
        %1006 = vmatprep.subr.mxu0 0.0
        %1007 = vmatpush1.msra.mxu0 %v569
        %1008 = vmatprep.subr.mxu0 0.0
        %1009 = vmatpush1.msra.mxu0 %v568
        %1010 = vmatprep.subr.mxu0 0.0
        %1011 = vmatpush1.msra.mxu0 %v567
        %1012 = vmatprep.subr.mxu0 0.0
        %1013 = vmatpush1.msra.mxu0 %v566
        %1014 = vmatprep.subr.mxu0 0.0
        %1015 = vmatpush1.msra.mxu0 %v565
        %1016 = vmatprep.subr.mxu0 0.0
        %1017 = vmatpush1.msra.mxu0 %v564
        %1018 = vmatprep.subr.mxu0 0.0
        %1019 = vmatpush1.msra.mxu0 %v563
        %1020 = vmatprep.subr.mxu0 0.0
        %1021 = vmatpush1.msra.mxu0 %v562
        %1022 = vmatprep.subr.mxu0 0.0
        %1023 = vmatpush1.msra.mxu0 %v561
        %1024 = vmatprep.subr.mxu0 0.0
        %1025 = vmatpush1.msra.mxu0 %v560
        %1026 = vmatprep.subr.mxu0 0.0
        %1027 = vmatpush1.msra.mxu0 %v559
        %1028 = vmatprep.subr.mxu0 0.0
        %1029 = vmatpush2.msra.mxu0 %v590
        %1030 = vmatprep.subr.mxu0 0.0
        %1031 = vmatpush2.msra.mxu0 %v589
        %1032 = vmatprep.subr.mxu0 0.0
        %1033 = vmatpush2.msra.mxu0 %v588
        %1034 = vmatprep.subr.mxu0 0.0
        %1035 = vmatpush2.msra.mxu0 %v587
        %1036 = vmatprep.subr.mxu0 0.0
        %1037 = vmatpush2.msra.mxu0 %v586
        %1038 = vmatprep.subr.mxu0 0.0
        %1039 = vmatpush2.msra.mxu0 %v585
        %1040 = vmatprep.subr.mxu0 0.0
        %1041 = vmatpush2.msra.mxu0 %v584
        %1042 = vmatprep.subr.mxu0 0.0
        %1043 = vmatpush2.msra.mxu0 %v583
        %1044 = vmatprep.subr.mxu0 0.0
        %1045 = vmatpush2.msra.mxu0 %v582
        %1046 = vmatprep.subr.mxu0 0.0
        %1047 = vmatpush2.msra.mxu0 %v581
        %1048 = vmatprep.subr.mxu0 0.0
        %1049 = vmatpush2.msra.mxu0 %v580
        %1050 = vmatprep.subr.mxu0 0.0
        %1051 = vmatpush2.msra.mxu0 %v579
        %1052 = vmatprep.subr.mxu0 0.0
        %1053 = vmatpush2.msra.mxu0 %v578
        %1054 = vmatprep.subr.mxu0 0.0
        %1055 = vmatpush2.msra.mxu0 %v577
        %1056 = vmatprep.subr.mxu0 0.0
        %1057 = vmatpush2.msra.mxu0 %v576
        %1058 = vmatprep.subr.mxu0 0.0
        %1059 = vmatpush2.msra.mxu0 %v575
        %1060 = vmatprep.mubr.f32.mxu0 %v176
        %1061 = vmatmul.mubr.f32.gmra.mxu0 %v175
        %v1062 = vpop.f32.mrf.mxu0
        %v1063 = vadd.f32 %v605, %v1062
        %v1064 = vpop.f32.mrf.mxu0
        %1065 = vmatprep.mubr.f32.mxu0 %v179
        %1066 = vmatmul.mubr.f32.gmra.mxu0 %v178
        %v1067 = vpop.f32.mrf.mxu0
        %v1068 = vadd.f32 %v605, %v1067
        %v1069 = vpop.f32.mrf.mxu0
        %1070 = vmatprep.mubr.f32.mxu0 %v182
        %1071 = vmatmul.mubr.f32.gmra.mxu0 %v181
        %v1072 = vpop.f32.mrf.mxu0
        %v1073 = vadd.f32 %v605, %v1072
        %v1074 = vpop.f32.mrf.mxu0
        %1075 = vmatprep.mubr.f32.mxu0 %v185
        %1076 = vmatmul.mubr.f32.gmra.mxu0 %v184
        %v1077 = vpop.f32.mrf.mxu0
        %v1078 = vadd.f32 %v605, %v1077
        %v1079 = vpop.f32.mrf.mxu0
        %1080 = vmatprep.mubr.f32.mxu0 %v188
        %1081 = vmatmul.mubr.f32.gmra.mxu0 %v187
        %v1082 = vpop.f32.mrf.mxu0
        %v1083 = vadd.f32 %v605, %v1082
        %v1084 = vpop.f32.mrf.mxu0
        %1085 = vmatprep.mubr.f32.mxu0 %v191
        %1086 = vmatmul.mubr.f32.gmra.mxu0 %v190
        %v1087 = vpop.f32.mrf.mxu0
        %v1088 = vadd.f32 %v605, %v1087
        %v1089 = vpop.f32.mrf.mxu0
        %1090 = vmatprep.mubr.f32.mxu0 %v194
        %1091 = vmatmul.mubr.f32.gmra.mxu0 %v193
        %v1092 = vpop.f32.mrf.mxu0
        %v1093 = vadd.f32 %v605, %v1092
        %v1094 = vpop.f32.mrf.mxu0
        %1095 = vmatprep.mubr.f32.mxu0 %v197
        %1096 = vmatmul.mubr.f32.gmra.mxu0 %v196
        %v1097 = vpop.f32.mrf.mxu0
        %v1098 = vadd.f32 %v605, %v1097
        %v1099 = vpop.f32.mrf.mxu0
        %1100 = vmatprep.mubr.f32.mxu0 %v200
        %1101 = vmatmul.mubr.f32.gmra.mxu0 %v199
        %v1102 = vpop.f32.mrf.mxu0
        %v1103 = vadd.f32 %v605, %v1102
        %v1104 = vpop.f32.mrf.mxu0
        %1105 = vmatprep.mubr.f32.mxu0 %v203
        %1106 = vmatmul.mubr.f32.gmra.mxu0 %v202
        %v1107 = vpop.f32.mrf.mxu0
        %v1108 = vadd.f32 %v605, %v1107
        %v1109 = vpop.f32.mrf.mxu0
        %1110 = vmatprep.mubr.f32.mxu0 %v206
        %1111 = vmatmul.mubr.f32.gmra.mxu0 %v205
        %v1112 = vpop.f32.mrf.mxu0
        %v1113 = vadd.f32 %v605, %v1112
        %v1114 = vpop.f32.mrf.mxu0
        %1115 = vmatprep.mubr.f32.mxu0 %v209
        %1116 = vmatmul.mubr.f32.gmra.mxu0 %v208
        %v1117 = vpop.f32.mrf.mxu0
        %v1118 = vadd.f32 %v605, %v1117
        %v1119 = vpop.f32.mrf.mxu0
        %1120 = vmatprep.mubr.f32.mxu0 %v212
        %1121 = vmatmul.mubr.f32.gmra.mxu0 %v211
        %v1122 = vpop.f32.mrf.mxu0
        %v1123 = vadd.f32 %v605, %v1122
        %v1124 = vpop.f32.mrf.mxu0
        %1125 = vmatprep.mubr.f32.mxu0 %v215
        %1126 = vmatmul.mubr.f32.gmra.mxu0 %v214
        %v1127 = vpop.f32.mrf.mxu0
        %v1128 = vadd.f32 %v605, %v1127
        %v1129 = vpop.f32.mrf.mxu0
        %1130 = vmatprep.mubr.f32.mxu0 %v218
        %1131 = vmatmul.mubr.f32.gmra.mxu0 %v217
        %v1132 = vpop.f32.mrf.mxu0
        %v1133 = vadd.f32 %v605, %v1132
        %v1134 = vpop.f32.mrf.mxu0
        %1135 = vmatprep.mubr.f32.mxu0 %v221
        %1136 = vmatmul.mubr.f32.gmra.mxu0 %v220
        %v1137 = vpop.f32.mrf.mxu0
        %v1138 = vadd.f32 %v605, %v1137
        %v1139 = vpop.f32.mrf.mxu0
        %1140 = vmatprep.mubr.f32.mxu0 %v224
        %1141 = vmatmul.mubr.f32.gmra.mxu0 %v223
        %v1142 = vpop.f32.mrf.mxu0
        %v1143 = vadd.f32 %v605, %v1142
        %v1144 = vpop.f32.mrf.mxu0
        %1145 = vmatprep.mubr.f32.mxu0 %v227
        %1146 = vmatmul.mubr.f32.gmra.mxu0 %v226
        %v1147 = vpop.f32.mrf.mxu0
        %v1148 = vadd.f32 %v605, %v1147
        %v1149 = vpop.f32.mrf.mxu0
        %1150 = vmatprep.mubr.f32.mxu0 %v230
        %1151 = vmatmul.mubr.f32.gmra.mxu0 %v229
        %v1152 = vpop.f32.mrf.mxu0
        %v1153 = vadd.f32 %v605, %v1152
        %v1154 = vpop.f32.mrf.mxu0
        %1155 = vmatprep.mubr.f32.mxu0 %v233
        %1156 = vmatmul.mubr.f32.gmra.mxu0 %v232
        %v1157 = vpop.f32.mrf.mxu0
        %v1158 = vadd.f32 %v605, %v1157
        %v1159 = vpop.f32.mrf.mxu0
        %1160 = vmatprep.mubr.f32.mxu0 %v236
        %1161 = vmatmul.mubr.f32.gmra.mxu0 %v235
        %v1162 = vpop.f32.mrf.mxu0
        %v1163 = vadd.f32 %v605, %v1162
        %v1164 = vpop.f32.mrf.mxu0
        %1165 = vmatprep.mubr.f32.mxu0 %v239
        %1166 = vmatmul.mubr.f32.gmra.mxu0 %v238
        %v1167 = vpop.f32.mrf.mxu0
        %v1168 = vadd.f32 %v605, %v1167
        %v1169 = vpop.f32.mrf.mxu0
        %1170 = vmatprep.mubr.f32.mxu0 %v242
        %1171 = vmatmul.mubr.f32.gmra.mxu0 %v241
        %v1172 = vpop.f32.mrf.mxu0
        %v1173 = vadd.f32 %v605, %v1172
        %v1174 = vpop.f32.mrf.mxu0
        %1175 = vmatprep.mubr.f32.mxu0 %v245
        %1176 = vmatmul.mubr.f32.gmra.mxu0 %v244
        %v1177 = vpop.f32.mrf.mxu0
        %v1178 = vadd.f32 %v605, %v1177
        %v1179 = vpop.f32.mrf.mxu0
        %1180 = vmatprep.mubr.f32.mxu0 %v248
        %1181 = vmatmul.mubr.f32.gmra.mxu0 %v247
        %v1182 = vpop.f32.mrf.mxu0
        %v1183 = vadd.f32 %v605, %v1182
        %v1184 = vpop.f32.mrf.mxu0
        %1185 = vmatprep.mubr.f32.mxu0 %v251
        %1186 = vmatmul.mubr.f32.gmra.mxu0 %v250
        %v1187 = vpop.f32.mrf.mxu0
        %v1188 = vadd.f32 %v605, %v1187
        %v1189 = vpop.f32.mrf.mxu0
        %1190 = vmatprep.mubr.f32.mxu0 %v254
        %1191 = vmatmul.mubr.f32.gmra.mxu0 %v253
        %v1192 = vpop.f32.mrf.mxu0
        %v1193 = vadd.f32 %v605, %v1192
        %v1194 = vpop.f32.mrf.mxu0
        %1195 = vmatprep.mubr.f32.mxu0 %v257
        %1196 = vmatmul.mubr.f32.gmra.mxu0 %v256
        %v1197 = vpop.f32.mrf.mxu0
        %v1198 = vadd.f32 %v605, %v1197
        %v1199 = vpop.f32.mrf.mxu0
        %1200 = vmatprep.mubr.f32.mxu0 %v260
        %1201 = vmatmul.mubr.f32.gmra.mxu0 %v259
        %v1202 = vpop.f32.mrf.mxu0
        %v1203 = vadd.f32 %v605, %v1202
        %v1204 = vpop.f32.mrf.mxu0
        %1205 = vmatprep.mubr.f32.mxu0 %v263
        %1206 = vmatmul.mubr.f32.gmra.mxu0 %v262
        %v1207 = vpop.f32.mrf.mxu0
        %v1208 = vadd.f32 %v605, %v1207
        %v1209 = vpop.f32.mrf.mxu0
        %1210 = vmatprep.mubr.f32.mxu0 %v266
        %1211 = vmatmul.mubr.f32.gmra.mxu0 %v265
        %v1212 = vpop.f32.mrf.mxu0
        %v1213 = vadd.f32 %v605, %v1212
        %v1214 = vpop.f32.mrf.mxu0
        %1215 = vmatprep.mubr.f32.mxu0 %v269
        %1216 = vmatmul.mubr.f32.gmra.mxu0 %v268
        %v1217 = vpop.f32.mrf.mxu0
        %v1218 = vadd.f32 %v605, %v1217
        %v1219 = vpop.f32.mrf.mxu0
        %1220 = vmatprep.mubr.f32.mxu0 %v272
        %1221 = vmatmul.mubr.f32.gmra.mxu0 %v271
        %v1222 = vpop.f32.mrf.mxu0
        %v1223 = vadd.f32 %v605, %v1222
        %v1224 = vpop.f32.mrf.mxu0
        %1225 = vmatprep.mubr.f32.mxu0 %v275
        %1226 = vmatmul.mubr.f32.gmra.mxu0 %v274
        %v1227 = vpop.f32.mrf.mxu0
        %v1228 = vadd.f32 %v605, %v1227
        %v1229 = vpop.f32.mrf.mxu0
        %1230 = vmatprep.mubr.f32.mxu0 %v278
        %1231 = vmatmul.mubr.f32.gmra.mxu0 %v277
        %v1232 = vpop.f32.mrf.mxu0
        %v1233 = vadd.f32 %v605, %v1232
        %v1234 = vpop.f32.mrf.mxu0
        %1235 = vmatprep.mubr.f32.mxu0 %v281
        %1236 = vmatmul.mubr.f32.gmra.mxu0 %v280
        %v1237 = vpop.f32.mrf.mxu0
        %v1238 = vadd.f32 %v605, %v1237
        %v1239 = vpop.f32.mrf.mxu0
        %1240 = vmatprep.mubr.f32.mxu0 %v284
        %1241 = vmatmul.mubr.f32.gmra.mxu0 %v283
        %v1242 = vpop.f32.mrf.mxu0
        %v1243 = vadd.f32 %v605, %v1242
        %v1244 = vpop.f32.mrf.mxu0
        %1245 = vmatprep.mubr.f32.mxu0 %v287
        %1246 = vmatmul.mubr.f32.gmra.mxu0 %v286
        %v1247 = vpop.f32.mrf.mxu0
        %v1248 = vadd.f32 %v605, %v1247
        %v1249 = vpop.f32.mrf.mxu0
        %1250 = vmatprep.mubr.f32.mxu0 %v290
        %1251 = vmatmul.mubr.f32.gmra.mxu0 %v289
        %v1252 = vpop.f32.mrf.mxu0
        %v1253 = vadd.f32 %v605, %v1252
        %v1254 = vpop.f32.mrf.mxu0
        %1255 = vmatprep.mubr.f32.mxu0 %v293
        %1256 = vmatmul.mubr.f32.gmra.mxu0 %v292
        %v1257 = vpop.f32.mrf.mxu0
        %v1258 = vadd.f32 %v605, %v1257
        %v1259 = vpop.f32.mrf.mxu0
        %1260 = vmatprep.mubr.f32.mxu0 %v296
        %1261 = vmatmul.mubr.f32.gmra.mxu0 %v295
        %v1262 = vpop.f32.mrf.mxu0
        %v1263 = vadd.f32 %v605, %v1262
        %v1264 = vpop.f32.mrf.mxu0
        %1265 = vmatprep.mubr.f32.mxu0 %v299
        %1266 = vmatmul.mubr.f32.gmra.mxu0 %v298
        %v1267 = vpop.f32.mrf.mxu0
        %v1268 = vadd.f32 %v605, %v1267
        %v1269 = vpop.f32.mrf.mxu0
        %1270 = vmatprep.mubr.f32.mxu0 %v302
        %1271 = vmatmul.mubr.f32.gmra.mxu0 %v301
        %v1272 = vpop.f32.mrf.mxu0
        %v1273 = vadd.f32 %v605, %v1272
        %v1274 = vpop.f32.mrf.mxu0
        %1275 = vmatprep.mubr.f32.mxu0 %v305
        %1276 = vmatmul.mubr.f32.gmra.mxu0 %v304
        %v1277 = vpop.f32.mrf.mxu0
        %v1278 = vadd.f32 %v605, %v1277
        %v1279 = vpop.f32.mrf.mxu0
        %1280 = vmatprep.mubr.f32.mxu0 %v308
        %1281 = vmatmul.mubr.f32.gmra.mxu0 %v307
        %v1282 = vpop.f32.mrf.mxu0
        %v1283 = vadd.f32 %v605, %v1282
        %v1284 = vpop.f32.mrf.mxu0
        %1285 = vmatprep.mubr.f32.mxu0 %v311
        %1286 = vmatmul.mubr.f32.gmra.mxu0 %v310
        %v1287 = vpop.f32.mrf.mxu0
        %v1288 = vadd.f32 %v605, %v1287
        %v1289 = vpop.f32.mrf.mxu0
        %1290 = vmatprep.mubr.f32.mxu0 %v314
        %1291 = vmatmul.mubr.f32.gmra.mxu0 %v313
        %v1292 = vpop.f32.mrf.mxu0
        %v1293 = vadd.f32 %v605, %v1292
        %v1294 = vpop.f32.mrf.mxu0
        %1295 = vmatprep.mubr.f32.mxu0 %v317
        %1296 = vmatmul.mubr.f32.gmra.mxu0 %v316
        %v1297 = vpop.f32.mrf.mxu0
        %v1298 = vadd.f32 %v605, %v1297
        %v1299 = vpop.f32.mrf.mxu0
        %1300 = vmatprep.mubr.f32.mxu0 %v320
        %1301 = vmatmul.mubr.f32.gmra.mxu0 %v319
        %v1302 = vpop.f32.mrf.mxu0
        %v1303 = vadd.f32 %v605, %v1302
        %v1304 = vpop.f32.mrf.mxu0
        %1305 = vmatprep.mubr.f32.mxu0 %v323
        %1306 = vmatmul.mubr.f32.gmra.mxu0 %v322
        %v1307 = vpop.f32.mrf.mxu0
        %v1308 = vadd.f32 %v605, %v1307
        %v1309 = vpop.f32.mrf.mxu0
        %1310 = vmatprep.mubr.f32.mxu0 %v326
        %1311 = vmatmul.mubr.f32.gmra.mxu0 %v325
        %v1312 = vpop.f32.mrf.mxu0
        %v1313 = vadd.f32 %v605, %v1312
        %v1314 = vpop.f32.mrf.mxu0
        %1315 = vmatprep.mubr.f32.mxu0 %v329
        %1316 = vmatmul.mubr.f32.gmra.mxu0 %v328
        %v1317 = vpop.f32.mrf.mxu0
        %v1318 = vadd.f32 %v605, %v1317
        %v1319 = vpop.f32.mrf.mxu0
        %1320 = vmatprep.mubr.f32.mxu0 %v332
        %1321 = vmatmul.mubr.f32.gmra.mxu0 %v331
        %v1322 = vpop.f32.mrf.mxu0
        %v1323 = vadd.f32 %v605, %v1322
        %v1324 = vpop.f32.mrf.mxu0
        %1325 = vmatprep.mubr.f32.mxu0 %v335
        %1326 = vmatmul.mubr.f32.gmra.mxu0 %v334
        %v1327 = vpop.f32.mrf.mxu0
        %v1328 = vadd.f32 %v605, %v1327
        %v1329 = vpop.f32.mrf.mxu0
        %1330 = vmatprep.mubr.f32.mxu0 %v338
        %1331 = vmatmul.mubr.f32.gmra.mxu0 %v337
        %v1332 = vpop.f32.mrf.mxu0
        %v1333 = vadd.f32 %v605, %v1332
        %v1334 = vpop.f32.mrf.mxu0
        %1335 = vmatprep.mubr.f32.mxu0 %v341
        %1336 = vmatmul.mubr.f32.gmra.mxu0 %v340
        %v1337 = vpop.f32.mrf.mxu0
        %v1338 = vadd.f32 %v605, %v1337
        %v1339 = vpop.f32.mrf.mxu0
        %1340 = vmatprep.mubr.f32.mxu0 %v344
        %1341 = vmatmul.mubr.f32.gmra.mxu0 %v343
        %v1342 = vpop.f32.mrf.mxu0
        %v1343 = vadd.f32 %v605, %v1342
        %v1344 = vpop.f32.mrf.mxu0
        %1345 = vmatprep.mubr.f32.mxu0 %v347
        %1346 = vmatmul.mubr.f32.gmra.mxu0 %v346
        %v1347 = vpop.f32.mrf.mxu0
        %v1348 = vadd.f32 %v605, %v1347
        %v1349 = vpop.f32.mrf.mxu0
        %1350 = vmatprep.mubr.f32.mxu0 %v350
        %1351 = vmatmul.mubr.f32.gmra.mxu0 %v349
        %v1352 = vpop.f32.mrf.mxu0
        %v1353 = vadd.f32 %v605, %v1352
        %v1354 = vpop.f32.mrf.mxu0
        %1355 = vmatprep.mubr.f32.mxu0 %v353
        %1356 = vmatmul.mubr.f32.gmra.mxu0 %v352
        %v1357 = vpop.f32.mrf.mxu0
        %v1358 = vadd.f32 %v605, %v1357
        %v1359 = vpop.f32.mrf.mxu0
        %1360 = vmatprep.mubr.f32.mxu0 %v356
        %1361 = vmatmul.mubr.f32.gmra.mxu0 %v355
        %v1362 = vpop.f32.mrf.mxu0
        %v1363 = vadd.f32 %v605, %v1362
        %v1364 = vpop.f32.mrf.mxu0
        %1365 = vmatprep.mubr.f32.mxu0 %v359
        %1366 = vmatmul.mubr.f32.gmra.mxu0 %v358
        %v1367 = vpop.f32.mrf.mxu0
        %v1368 = vadd.f32 %v605, %v1367
        %v1369 = vpop.f32.mrf.mxu0
        %1370 = vmatprep.mubr.f32.mxu0 %v362
        %1371 = vmatmul.mubr.f32.gmra.mxu0 %v361
        %v1372 = vpop.f32.mrf.mxu0
        %v1373 = vadd.f32 %v605, %v1372
        %v1374 = vpop.f32.mrf.mxu0
        %1375 = vmatprep.mubr.f32.mxu0 %v365
        %1376 = vmatmul.mubr.f32.gmra.mxu0 %v364
        %v1377 = vpop.f32.mrf.mxu0
        %v1378 = vadd.f32 %v605, %v1377
        %v1379 = vpop.f32.mrf.mxu0
        %1380 = vmatprep.mubr.f32.mxu0 %v368
        %1381 = vmatmul.mubr.f32.gmra.mxu0 %v367
        %v1382 = vpop.f32.mrf.mxu0
        %v1383 = vadd.f32 %v605, %v1382
        %v1384 = vpop.f32.mrf.mxu0
        %1385 = vmatprep.mubr.f32.mxu0 %v371
        %1386 = vmatmul.mubr.f32.gmra.mxu0 %v370
        %v1387 = vpop.f32.mrf.mxu0
        %v1388 = vadd.f32 %v605, %v1387
        %v1389 = vpop.f32.mrf.mxu0
        %1390 = vmatprep.mubr.f32.mxu0 %v374
        %1391 = vmatmul.mubr.f32.gmra.mxu0 %v373
        %v1392 = vpop.f32.mrf.mxu0
        %v1393 = vadd.f32 %v605, %v1392
        %v1394 = vpop.f32.mrf.mxu0
        %1395 = vmatprep.mubr.f32.mxu0 %v377
        %1396 = vmatmul.mubr.f32.gmra.mxu0 %v376
        %v1397 = vpop.f32.mrf.mxu0
        %v1398 = vadd.f32 %v605, %v1397
        %v1399 = vpop.f32.mrf.mxu0
        %1400 = vmatprep.mubr.f32.mxu0 %v380
        %1401 = vmatmul.mubr.f32.gmra.mxu0 %v379
        %v1402 = vpop.f32.mrf.mxu0
        %v1403 = vadd.f32 %v605, %v1402
        %v1404 = vpop.f32.mrf.mxu0
        %1405 = vmatprep.mubr.f32.mxu0 %v383
        %1406 = vmatmul.mubr.f32.gmra.mxu0 %v382
        %v1407 = vpop.f32.mrf.mxu0
        %v1408 = vadd.f32 %v605, %v1407
        %v1409 = vpop.f32.mrf.mxu0
        %1410 = vmatprep.mubr.f32.mxu0 %v386
        %1411 = vmatmul.mubr.f32.gmra.mxu0 %v385
        %v1412 = vpop.f32.mrf.mxu0
        %v1413 = vadd.f32 %v605, %v1412
        %v1414 = vpop.f32.mrf.mxu0
        %1415 = vmatprep.mubr.f32.mxu0 %v389
        %1416 = vmatmul.mubr.f32.gmra.mxu0 %v388
        %v1417 = vpop.f32.mrf.mxu0
        %v1418 = vadd.f32 %v605, %v1417
        %v1419 = vpop.f32.mrf.mxu0
        %1420 = vmatprep.mubr.f32.mxu0 %v392
        %1421 = vmatmul.mubr.f32.gmra.mxu0 %v391
        %v1422 = vpop.f32.mrf.mxu0
        %v1423 = vadd.f32 %v605, %v1422
        %v1424 = vpop.f32.mrf.mxu0
        %1425 = vmatprep.mubr.f32.mxu0 %v395
        %1426 = vmatmul.mubr.f32.gmra.mxu0 %v394
        %v1427 = vpop.f32.mrf.mxu0
        %v1428 = vadd.f32 %v605, %v1427
        %v1429 = vpop.f32.mrf.mxu0
        %1430 = vmatprep.mubr.f32.mxu0 %v398
        %1431 = vmatmul.mubr.f32.gmra.mxu0 %v397
        %v1432 = vpop.f32.mrf.mxu0
        %v1433 = vadd.f32 %v605, %v1432
        %v1434 = vpop.f32.mrf.mxu0
        %1435 = vmatprep.mubr.f32.mxu0 %v401
        %1436 = vmatmul.mubr.f32.gmra.mxu0 %v400
        %v1437 = vpop.f32.mrf.mxu0
        %v1438 = vadd.f32 %v605, %v1437
        %v1439 = vpop.f32.mrf.mxu0
        %1440 = vmatprep.mubr.f32.mxu0 %v404
        %1441 = vmatmul.mubr.f32.gmra.mxu0 %v403
        %v1442 = vpop.f32.mrf.mxu0
        %v1443 = vadd.f32 %v605, %v1442
        %v1444 = vpop.f32.mrf.mxu0
        %1445 = vmatprep.mubr.f32.mxu0 %v407
        %1446 = vmatmul.mubr.f32.gmra.mxu0 %v406
        %v1447 = vpop.f32.mrf.mxu0
        %v1448 = vadd.f32 %v605, %v1447
        %v1449 = vpop.f32.mrf.mxu0
        %1450 = vmatprep.mubr.f32.mxu0 %v410
        %1451 = vmatmul.mubr.f32.gmra.mxu0 %v409
        %v1452 = vpop.f32.mrf.mxu0
        %v1453 = vadd.f32 %v605, %v1452
        %v1454 = vpop.f32.mrf.mxu0
        %1455 = vmatprep.mubr.f32.mxu0 %v413
        %1456 = vmatmul.mubr.f32.gmra.mxu0 %v412
        %v1457 = vpop.f32.mrf.mxu0
        %v1458 = vadd.f32 %v605, %v1457
        %v1459 = vpop.f32.mrf.mxu0
        %1460 = vmatprep.mubr.f32.mxu0 %v416
        %1461 = vmatmul.mubr.f32.gmra.mxu0 %v415
        %v1462 = vpop.f32.mrf.mxu0
        %v1463 = vadd.f32 %v605, %v1462
        %v1464 = vpop.f32.mrf.mxu0
        %1465 = vmatprep.mubr.f32.mxu0 %v419
        %1466 = vmatmul.mubr.f32.gmra.mxu0 %v418
        %v1467 = vpop.f32.mrf.mxu0
        %v1468 = vadd.f32 %v605, %v1467
        %v1469 = vpop.f32.mrf.mxu0
        %1470 = vmatprep.mubr.f32.mxu0 %v422
        %1471 = vmatmul.mubr.f32.gmra.mxu0 %v421
        %v1472 = vpop.f32.mrf.mxu0
        %v1473 = vadd.f32 %v605, %v1472
        %v1474 = vpop.f32.mrf.mxu0
        %1475 = vmatprep.mubr.f32.mxu0 %v425
        %1476 = vmatmul.mubr.f32.gmra.mxu0 %v424
        %v1477 = vpop.f32.mrf.mxu0
        %v1478 = vadd.f32 %v605, %v1477
        %v1479 = vpop.f32.mrf.mxu0
        %1480 = vmatprep.mubr.f32.mxu0 %v428
        %1481 = vmatmul.mubr.f32.gmra.mxu0 %v427
        %v1482 = vpop.f32.mrf.mxu0
        %v1483 = vadd.f32 %v605, %v1482
        %v1484 = vpop.f32.mrf.mxu0
        %1485 = vmatprep.mubr.f32.mxu0 %v431
        %1486 = vmatmul.mubr.f32.gmra.mxu0 %v430
        %v1487 = vpop.f32.mrf.mxu0
        %v1488 = vadd.f32 %v605, %v1487
        %v1489 = vpop.f32.mrf.mxu0
        %1490 = vmatprep.mubr.f32.mxu0 %v434
        %1491 = vmatmul.mubr.f32.gmra.mxu0 %v433
        %v1492 = vpop.f32.mrf.mxu0
        %v1493 = vadd.f32 %v605, %v1492
        %v1494 = vpop.f32.mrf.mxu0
        %1495 = vmatprep.mubr.f32.mxu0 %v437
        %1496 = vmatmul.mubr.f32.gmra.mxu0 %v436
        %v1497 = vpop.f32.mrf.mxu0
        %v1498 = vadd.f32 %v605, %v1497
        %v1499 = vpop.f32.mrf.mxu0
        %1500 = vmatprep.mubr.f32.mxu0 %v440
        %1501 = vmatmul.mubr.f32.gmra.mxu0 %v439
        %v1502 = vpop.f32.mrf.mxu0
        %v1503 = vadd.f32 %v605, %v1502
        %v1504 = vpop.f32.mrf.mxu0
        %1505 = vmatprep.mubr.f32.mxu0 %v443
        %1506 = vmatmul.mubr.f32.gmra.mxu0 %v442
        %v1507 = vpop.f32.mrf.mxu0
        %v1508 = vadd.f32 %v605, %v1507
        %v1509 = vpop.f32.mrf.mxu0
        %1510 = vmatprep.mubr.f32.mxu0 %v446
        %1511 = vmatmul.mubr.f32.gmra.mxu0 %v445
        %v1512 = vpop.f32.mrf.mxu0
        %v1513 = vadd.f32 %v605, %v1512
        %v1514 = vpop.f32.mrf.mxu0
        %1515 = vmatprep.mubr.f32.mxu0 %v449
        %1516 = vmatmul.mubr.f32.gmra.mxu0 %v448
        %v1517 = vpop.f32.mrf.mxu0
        %v1518 = vadd.f32 %v605, %v1517
        %v1519 = vpop.f32.mrf.mxu0
        %1520 = vmatprep.mubr.f32.mxu0 %v452
        %1521 = vmatmul.mubr.f32.gmra.mxu0 %v451
        %v1522 = vpop.f32.mrf.mxu0
        %v1523 = vadd.f32 %v605, %v1522
        %v1524 = vpop.f32.mrf.mxu0
        %1525 = vmatprep.mubr.f32.mxu0 %v455
        %1526 = vmatmul.mubr.f32.gmra.mxu0 %v454
        %v1527 = vpop.f32.mrf.mxu0
        %v1528 = vadd.f32 %v605, %v1527
        %v1529 = vpop.f32.mrf.mxu0
        %1530 = vmatprep.mubr.f32.mxu0 %v458
        %1531 = vmatmul.mubr.f32.gmra.mxu0 %v457
        %v1532 = vpop.f32.mrf.mxu0
        %v1533 = vadd.f32 %v605, %v1532
        %v1534 = vpop.f32.mrf.mxu0
        %1535 = vmatprep.mubr.f32.mxu0 %v461
        %1536 = vmatmul.mubr.f32.gmra.mxu0 %v460
        %v1537 = vpop.f32.mrf.mxu0
        %v1538 = vadd.f32 %v605, %v1537
        %v1539 = vpop.f32.mrf.mxu0
        %1540 = vmatprep.mubr.f32.mxu0 %v464
        %1541 = vmatmul.mubr.f32.gmra.mxu0 %v463
        %v1542 = vpop.f32.mrf.mxu0
        %v1543 = vadd.f32 %v605, %v1542
        %v1544 = vpop.f32.mrf.mxu0
        %1545 = vmatprep.mubr.f32.mxu0 %v467
        %1546 = vmatmul.mubr.f32.gmra.mxu0 %v466
        %v1547 = vpop.f32.mrf.mxu0
        %v1548 = vadd.f32 %v605, %v1547
        %v1549 = vpop.f32.mrf.mxu0
        %1550 = vmatprep.mubr.f32.mxu0 %v470
        %1551 = vmatmul.mubr.f32.gmra.mxu0 %v469
        %v1552 = vpop.f32.mrf.mxu0
        %v1553 = vadd.f32 %v605, %v1552
        %v1554 = vpop.f32.mrf.mxu0
        %1555 = vmatprep.mubr.f32.mxu0 %v473
        %1556 = vmatmul.mubr.f32.gmra.mxu0 %v472
        %v1557 = vpop.f32.mrf.mxu0
        %v1558 = vadd.f32 %v605, %v1557
        %v1559 = vpop.f32.mrf.mxu0
        %1560 = vmatprep.mubr.f32.mxu0 %v476
        %1561 = vmatmul.mubr.f32.gmra.mxu0 %v475
        %v1562 = vpop.f32.mrf.mxu0
        %v1563 = vadd.f32 %v605, %v1562
        %v1564 = vpop.f32.mrf.mxu0
        %1565 = vmatprep.mubr.f32.mxu0 %v479
        %1566 = vmatmul.mubr.f32.gmra.mxu0 %v478
        %v1567 = vpop.f32.mrf.mxu0
        %v1568 = vadd.f32 %v605, %v1567
        %v1569 = vpop.f32.mrf.mxu0
        %1570 = vmatprep.mubr.f32.mxu0 %v482
        %1571 = vmatmul.mubr.f32.gmra.mxu0 %v481
        %v1572 = vpop.f32.mrf.mxu0
        %v1573 = vadd.f32 %v605, %v1572
        %v1574 = vpop.f32.mrf.mxu0
        %1575 = vmatprep.mubr.f32.mxu0 %v485
        %1576 = vmatmul.mubr.f32.gmra.mxu0 %v484
        %v1577 = vpop.f32.mrf.mxu0
        %v1578 = vadd.f32 %v605, %v1577
        %v1579 = vpop.f32.mrf.mxu0
        %1580 = vmatprep.mubr.f32.mxu0 %v488
        %1581 = vmatmul.mubr.f32.gmra.mxu0 %v487
        %v1582 = vpop.f32.mrf.mxu0
        %v1583 = vadd.f32 %v605, %v1582
        %v1584 = vpop.f32.mrf.mxu0
        %1585 = vmatprep.mubr.f32.mxu0 %v491
        %1586 = vmatmul.mubr.f32.gmra.mxu0 %v490
        %v1587 = vpop.f32.mrf.mxu0
        %v1588 = vadd.f32 %v605, %v1587
        %v1589 = vpop.f32.mrf.mxu0
        %1590 = vmatprep.mubr.f32.mxu0 %v494
        %1591 = vmatmul.mubr.f32.gmra.mxu0 %v493
        %v1592 = vpop.f32.mrf.mxu0
        %v1593 = vadd.f32 %v605, %v1592
        %v1594 = vpop.f32.mrf.mxu0
        %1595 = vmatprep.mubr.f32.mxu0 %v497
        %1596 = vmatmul.mubr.f32.gmra.mxu0 %v496
        %v1597 = vpop.f32.mrf.mxu0
        %v1598 = vadd.f32 %v605, %v1597
        %v1599 = vpop.f32.mrf.mxu0
        %1600 = vmatprep.mubr.f32.mxu0 %v500
        %1601 = vmatmul.mubr.f32.gmra.mxu0 %v499
        %v1602 = vpop.f32.mrf.mxu0
        %v1603 = vadd.f32 %v605, %v1602
        %v1604 = vpop.f32.mrf.mxu0
        %1605 = vmatprep.mubr.f32.mxu0 %v503
        %1606 = vmatmul.mubr.f32.gmra.mxu0 %v502
        %v1607 = vpop.f32.mrf.mxu0
        %v1608 = vadd.f32 %v605, %v1607
        %v1609 = vpop.f32.mrf.mxu0
        %1610 = vmatprep.mubr.f32.mxu0 %v506
        %1611 = vmatmul.mubr.f32.gmra.mxu0 %v505
        %v1612 = vpop.f32.mrf.mxu0
        %v1613 = vadd.f32 %v605, %v1612
        %v1614 = vpop.f32.mrf.mxu0
        %1615 = vmatprep.mubr.f32.mxu0 %v509
        %1616 = vmatmul.mubr.f32.gmra.mxu0 %v508
        %v1617 = vpop.f32.mrf.mxu0
        %v1618 = vadd.f32 %v605, %v1617
        %v1619 = vpop.f32.mrf.mxu0
        %1620 = vmatprep.mubr.f32.mxu0 %v512
        %1621 = vmatmul.mubr.f32.gmra.mxu0 %v511
        %v1622 = vpop.f32.mrf.mxu0
        %v1623 = vadd.f32 %v605, %v1622
        %v1624 = vpop.f32.mrf.mxu0
        %1625 = vmatprep.mubr.f32.mxu0 %v515
        %1626 = vmatmul.mubr.f32.gmra.mxu0 %v514
        %v1627 = vpop.f32.mrf.mxu0
        %v1628 = vadd.f32 %v605, %v1627
        %v1629 = vpop.f32.mrf.mxu0
        %1630 = vmatprep.mubr.f32.mxu0 %v518
        %1631 = vmatmul.mubr.f32.gmra.mxu0 %v517
        %v1632 = vpop.f32.mrf.mxu0
        %v1633 = vadd.f32 %v605, %v1632
        %v1634 = vpop.f32.mrf.mxu0
        %1635 = vmatprep.mubr.f32.mxu0 %v521
        %1636 = vmatmul.mubr.f32.gmra.mxu0 %v520
        %v1637 = vpop.f32.mrf.mxu0
        %v1638 = vadd.f32 %v605, %v1637
        %v1639 = vpop.f32.mrf.mxu0
        %1640 = vmatprep.mubr.f32.mxu0 %v524
        %1641 = vmatmul.mubr.f32.gmra.mxu0 %v523
        %v1642 = vpop.f32.mrf.mxu0
        %v1643 = vadd.f32 %v605, %v1642
        %v1644 = vpop.f32.mrf.mxu0
        %1645 = vmatprep.mubr.f32.mxu0 %v527
        %1646 = vmatmul.mubr.f32.gmra.mxu0 %v526
        %v1647 = vpop.f32.mrf.mxu0
        %v1648 = vadd.f32 %v605, %v1647
        %v1649 = vpop.f32.mrf.mxu0
        %1650 = vmatprep.mubr.f32.mxu0 %v530
        %1651 = vmatmul.mubr.f32.gmra.mxu0 %v529
        %v1652 = vpop.f32.mrf.mxu0
        %v1653 = vadd.f32 %v605, %v1652
        %v1654 = vpop.f32.mrf.mxu0
        %1655 = vmatprep.mubr.f32.mxu0 %v533
        %1656 = vmatmul.mubr.f32.gmra.mxu0 %v532
        %v1657 = vpop.f32.mrf.mxu0
        %v1658 = vadd.f32 %v605, %v1657
        %v1659 = vpop.f32.mrf.mxu0
        %1660 = vmatprep.mubr.f32.mxu0 %v536
        %1661 = vmatmul.mubr.f32.gmra.mxu0 %v535
        %v1662 = vpop.f32.mrf.mxu0
        %v1663 = vadd.f32 %v605, %v1662
        %v1664 = vpop.f32.mrf.mxu0
        %1665 = vmatprep.mubr.f32.mxu0 %v539
        %1666 = vmatmul.mubr.f32.gmra.mxu0 %v538
        %v1667 = vpop.f32.mrf.mxu0
        %v1668 = vadd.f32 %v605, %v1667
        %v1669 = vpop.f32.mrf.mxu0
        %1670 = vmatprep.mubr.f32.mxu0 %v542
        %1671 = vmatmul.mubr.f32.gmra.mxu0 %v541
        %v1672 = vpop.f32.mrf.mxu0
        %v1673 = vadd.f32 %v605, %v1672
        %v1674 = vpop.f32.mrf.mxu0
        %1675 = vmatprep.mubr.f32.mxu0 %v545
        %1676 = vmatmul.mubr.f32.gmra.mxu0 %v544
        %v1677 = vpop.f32.mrf.mxu0
        %v1678 = vadd.f32 %v605, %v1677
        %v1679 = vpop.f32.mrf.mxu0
        %1680 = vmatprep.mubr.f32.mxu0 %v548
        %1681 = vmatmul.mubr.f32.gmra.mxu0 %v547
        %v1682 = vpop.f32.mrf.mxu0
        %v1683 = vadd.f32 %v605, %v1682
        %v1684 = vpop.f32.mrf.mxu0
        %1685 = vmatprep.mubr.f32.mxu0 %v551
        %1686 = vmatmul.mubr.f32.gmra.mxu0 %v550
        %v1687 = vpop.f32.mrf.mxu0
        %v1688 = vadd.f32 %v605, %v1687
        %v1689 = vpop.f32.mrf.mxu0
        %1690 = vmatprep.mubr.f32.mxu0 %v554
        %1691 = vmatmul.mubr.f32.gmra.mxu0 %v553
        %v1692 = vpop.f32.mrf.mxu0
        %v1693 = vadd.f32 %v605, %v1692
        %v1694 = vpop.f32.mrf.mxu0
        %1695 = vmatprep.mubr.f32.mxu0 %v557
        %1696 = vmatmul.mubr.f32.gmra.mxu0 %v556
        %v1697 = vpop.f32.mrf.mxu0
        %v1698 = vadd.f32 %v605, %v1697
        %v1699 = vpop.f32.mrf.mxu0
        %1700 = vdwg.mxu0
        %1701 = vmatprep.subr.mxu0 0.0
        %1702 = vmatpush1.msra.mxu0 0.0
        %1703 = vmatprep.subr.mxu0 0.0
        %1704 = vmatpush1.msra.mxu0 0.0
        %1705 = vmatprep.subr.mxu0 0.0
        %1706 = vmatpush1.msra.mxu0 0.0
        %1707 = vmatprep.subr.mxu0 0.0
        %1708 = vmatpush1.msra.mxu0 0.0
        %1709 = vmatprep.subr.mxu0 0.0
        %1710 = vmatpush1.msra.mxu0 0.0
        %1711 = vmatprep.subr.mxu0 0.0
        %1712 = vmatpush1.msra.mxu0 0.0
        %1713 = vmatprep.subr.mxu0 0.0
        %1714 = vmatpush1.msra.mxu0 0.0
        %1715 = vmatprep.subr.mxu0 0.0
        %1716 = vmatpush1.msra.mxu0 %v994
        %1717 = vmatprep.subr.mxu0 0.0
        %1718 = vmatpush1.msra.mxu0 %v598
        %1719 = vmatprep.subr.mxu0 0.0
        %1720 = vmatpush1.msra.mxu0 %v597
        %1721 = vmatprep.subr.mxu0 0.0
        %1722 = vmatpush1.msra.mxu0 %v596
        %1723 = vmatprep.subr.mxu0 0.0
        %1724 = vmatpush1.msra.mxu0 %v595
        %1725 = vmatprep.subr.mxu0 0.0
        %1726 = vmatpush1.msra.mxu0 %v594
        %1727 = vmatprep.subr.mxu0 0.0
        %1728 = vmatpush1.msra.mxu0 %v593
        %1729 = vmatprep.subr.mxu0 0.0
        %1730 = vmatpush1.msra.mxu0 %v592
        %1731 = vmatprep.subr.mxu0 0.0
        %1732 = vmatpush1.msra.mxu0 %v591
        %1733 = vmatprep.subr.mxu0 0.0
        %1734 = vmatpush2.msra.mxu0 0.0
        %1735 = vmatprep.subr.mxu0 0.0
        %1736 = vmatpush2.msra.mxu0 0.0
        %1737 = vmatprep.subr.mxu0 0.0
        %1738 = vmatpush2.msra.mxu0 0.0
        %1739 = vmatprep.subr.mxu0 0.0
        %1740 = vmatpush2.msra.mxu0 0.0
        %1741 = vmatprep.subr.mxu0 0.0
        %1742 = vmatpush2.msra.mxu0 0.0
        %1743 = vmatprep.subr.mxu0 0.0
        %1744 = vmatpush2.msra.mxu0 0.0
        %1745 = vmatprep.subr.mxu0 0.0
        %1746 = vmatpush2.msra.mxu0 0.0
        %1747 = vmatprep.subr.mxu0 0.0
        %1748 = vmatpush2.msra.mxu0 0.0
        %1749 = vmatprep.subr.mxu0 0.0
        %1750 = vmatpush2.msra.mxu0 0.0
        %1751 = vmatprep.subr.mxu0 0.0
        %1752 = vmatpush2.msra.mxu0 0.0
        %1753 = vmatprep.subr.mxu0 0.0
        %1754 = vmatpush2.msra.mxu0 0.0
        %1755 = vmatprep.subr.mxu0 0.0
        %1756 = vmatpush2.msra.mxu0 0.0
        %1757 = vmatprep.subr.mxu0 0.0
        %1758 = vmatpush2.msra.mxu0 0.0
        %1759 = vmatprep.subr.mxu0 0.0
        %1760 = vmatpush2.msra.mxu0 0.0
        %1761 = vmatprep.subr.mxu0 0.0
        %1762 = vmatpush2.msra.mxu0 0.0
        %1763 = vmatprep.subr.mxu0 0.0
        %1764 = vmatpush2.msra.mxu0 0.0
        %1765 = vmatprep.mubr.f32.mxu0 0.0
        %1766 = vmatmul.mubr.f32.gmra.mxu0 %v609
        %v1767 = vpop.f32.mrf.mxu0
        %v1768 = vadd.f32 %v1063, %v1767
        %v1769 = vpop.f32.mrf.mxu0
        %1770 = vmatprep.mubr.f32.mxu0 0.0
        %1771 = vmatmul.mubr.f32.gmra.mxu0 %v612
        %v1772 = vpop.f32.mrf.mxu0
        %v1773 = vadd.f32 %v1068, %v1772
        %v1774 = vpop.f32.mrf.mxu0
        %1775 = vmatprep.mubr.f32.mxu0 0.0
        %1776 = vmatmul.mubr.f32.gmra.mxu0 %v615
        %v1777 = vpop.f32.mrf.mxu0
        %v1778 = vadd.f32 %v1073, %v1777
        %v1779 = vpop.f32.mrf.mxu0
        %1780 = vmatprep.mubr.f32.mxu0 0.0
        %1781 = vmatmul.mubr.f32.gmra.mxu0 %v618
        %v1782 = vpop.f32.mrf.mxu0
        %v1783 = vadd.f32 %v1078, %v1782
        %v1784 = vpop.f32.mrf.mxu0
        %1785 = vmatprep.mubr.f32.mxu0 0.0
        %1786 = vmatmul.mubr.f32.gmra.mxu0 %v621
        %v1787 = vpop.f32.mrf.mxu0
        %v1788 = vadd.f32 %v1083, %v1787
        %v1789 = vpop.f32.mrf.mxu0
        %1790 = vmatprep.mubr.f32.mxu0 0.0
        %1791 = vmatmul.mubr.f32.gmra.mxu0 %v624
        %v1792 = vpop.f32.mrf.mxu0
        %v1793 = vadd.f32 %v1088, %v1792
        %v1794 = vpop.f32.mrf.mxu0
        %1795 = vmatprep.mubr.f32.mxu0 0.0
        %1796 = vmatmul.mubr.f32.gmra.mxu0 %v627
        %v1797 = vpop.f32.mrf.mxu0
        %v1798 = vadd.f32 %v1093, %v1797
        %v1799 = vpop.f32.mrf.mxu0
        %1800 = vmatprep.mubr.f32.mxu0 0.0
        %1801 = vmatmul.mubr.f32.gmra.mxu0 %v630
        %v1802 = vpop.f32.mrf.mxu0
        %v1803 = vadd.f32 %v1098, %v1802
        %v1804 = vpop.f32.mrf.mxu0
        %1805 = vmatprep.mubr.f32.mxu0 0.0
        %1806 = vmatmul.mubr.f32.gmra.mxu0 %v633
        %v1807 = vpop.f32.mrf.mxu0
        %v1808 = vadd.f32 %v1103, %v1807
        %v1809 = vpop.f32.mrf.mxu0
        %1810 = vmatprep.mubr.f32.mxu0 0.0
        %1811 = vmatmul.mubr.f32.gmra.mxu0 %v636
        %v1812 = vpop.f32.mrf.mxu0
        %v1813 = vadd.f32 %v1108, %v1812
        %v1814 = vpop.f32.mrf.mxu0
        %1815 = vmatprep.mubr.f32.mxu0 0.0
        %1816 = vmatmul.mubr.f32.gmra.mxu0 %v639
        %v1817 = vpop.f32.mrf.mxu0
        %v1818 = vadd.f32 %v1113, %v1817
        %v1819 = vpop.f32.mrf.mxu0
        %1820 = vmatprep.mubr.f32.mxu0 0.0
        %1821 = vmatmul.mubr.f32.gmra.mxu0 %v642
        %v1822 = vpop.f32.mrf.mxu0
        %v1823 = vadd.f32 %v1118, %v1822
        %v1824 = vpop.f32.mrf.mxu0
        %1825 = vmatprep.mubr.f32.mxu0 0.0
        %1826 = vmatmul.mubr.f32.gmra.mxu0 %v645
        %v1827 = vpop.f32.mrf.mxu0
        %v1828 = vadd.f32 %v1123, %v1827
        %v1829 = vpop.f32.mrf.mxu0
        %1830 = vmatprep.mubr.f32.mxu0 0.0
        %1831 = vmatmul.mubr.f32.gmra.mxu0 %v648
        %v1832 = vpop.f32.mrf.mxu0
        %v1833 = vadd.f32 %v1128, %v1832
        %v1834 = vpop.f32.mrf.mxu0
        %1835 = vmatprep.mubr.f32.mxu0 0.0
        %1836 = vmatmul.mubr.f32.gmra.mxu0 %v651
        %v1837 = vpop.f32.mrf.mxu0
        %v1838 = vadd.f32 %v1133, %v1837
        %v1839 = vpop.f32.mrf.mxu0
        %1840 = vmatprep.mubr.f32.mxu0 0.0
        %1841 = vmatmul.mubr.f32.gmra.mxu0 %v654
        %v1842 = vpop.f32.mrf.mxu0
        %v1843 = vadd.f32 %v1138, %v1842
        %v1844 = vpop.f32.mrf.mxu0
        %1845 = vmatprep.mubr.f32.mxu0 0.0
        %1846 = vmatmul.mubr.f32.gmra.mxu0 %v657
        %v1847 = vpop.f32.mrf.mxu0
        %v1848 = vadd.f32 %v1143, %v1847
        %v1849 = vpop.f32.mrf.mxu0
        %1850 = vmatprep.mubr.f32.mxu0 0.0
        %1851 = vmatmul.mubr.f32.gmra.mxu0 %v660
        %v1852 = vpop.f32.mrf.mxu0
        %v1853 = vadd.f32 %v1148, %v1852
        %v1854 = vpop.f32.mrf.mxu0
        %1855 = vmatprep.mubr.f32.mxu0 0.0
        %1856 = vmatmul.mubr.f32.gmra.mxu0 %v663
        %v1857 = vpop.f32.mrf.mxu0
        %v1858 = vadd.f32 %v1153, %v1857
        %v1859 = vpop.f32.mrf.mxu0
        %1860 = vmatprep.mubr.f32.mxu0 0.0
        %1861 = vmatmul.mubr.f32.gmra.mxu0 %v666
        %v1862 = vpop.f32.mrf.mxu0
        %v1863 = vadd.f32 %v1158, %v1862
        %v1864 = vpop.f32.mrf.mxu0
        %1865 = vmatprep.mubr.f32.mxu0 0.0
        %1866 = vmatmul.mubr.f32.gmra.mxu0 %v669
        %v1867 = vpop.f32.mrf.mxu0
        %v1868 = vadd.f32 %v1163, %v1867
        %v1869 = vpop.f32.mrf.mxu0
        %1870 = vmatprep.mubr.f32.mxu0 0.0
        %1871 = vmatmul.mubr.f32.gmra.mxu0 %v672
        %v1872 = vpop.f32.mrf.mxu0
        %v1873 = vadd.f32 %v1168, %v1872
        %v1874 = vpop.f32.mrf.mxu0
        %1875 = vmatprep.mubr.f32.mxu0 0.0
        %1876 = vmatmul.mubr.f32.gmra.mxu0 %v675
        %v1877 = vpop.f32.mrf.mxu0
        %v1878 = vadd.f32 %v1173, %v1877
        %v1879 = vpop.f32.mrf.mxu0
        %1880 = vmatprep.mubr.f32.mxu0 0.0
        %1881 = vmatmul.mubr.f32.gmra.mxu0 %v678
        %v1882 = vpop.f32.mrf.mxu0
        %v1883 = vadd.f32 %v1178, %v1882
        %v1884 = vpop.f32.mrf.mxu0
        %1885 = vmatprep.mubr.f32.mxu0 0.0
        %1886 = vmatmul.mubr.f32.gmra.mxu0 %v681
        %v1887 = vpop.f32.mrf.mxu0
        %v1888 = vadd.f32 %v1183, %v1887
        %v1889 = vpop.f32.mrf.mxu0
        %1890 = vmatprep.mubr.f32.mxu0 0.0
        %1891 = vmatmul.mubr.f32.gmra.mxu0 %v684
        %v1892 = vpop.f32.mrf.mxu0
        %v1893 = vadd.f32 %v1188, %v1892
        %v1894 = vpop.f32.mrf.mxu0
        %1895 = vmatprep.mubr.f32.mxu0 0.0
        %1896 = vmatmul.mubr.f32.gmra.mxu0 %v687
        %v1897 = vpop.f32.mrf.mxu0
        %v1898 = vadd.f32 %v1193, %v1897
        %v1899 = vpop.f32.mrf.mxu0
        %1900 = vmatprep.mubr.f32.mxu0 0.0
        %1901 = vmatmul.mubr.f32.gmra.mxu0 %v690
        %v1902 = vpop.f32.mrf.mxu0
        %v1903 = vadd.f32 %v1198, %v1902
        %v1904 = vpop.f32.mrf.mxu0
        %1905 = vmatprep.mubr.f32.mxu0 0.0
        %1906 = vmatmul.mubr.f32.gmra.mxu0 %v693
        %v1907 = vpop.f32.mrf.mxu0
        %v1908 = vadd.f32 %v1203, %v1907
        %v1909 = vpop.f32.mrf.mxu0
        %1910 = vmatprep.mubr.f32.mxu0 0.0
        %1911 = vmatmul.mubr.f32.gmra.mxu0 %v696
        %v1912 = vpop.f32.mrf.mxu0
        %v1913 = vadd.f32 %v1208, %v1912
        %v1914 = vpop.f32.mrf.mxu0
        %1915 = vmatprep.mubr.f32.mxu0 0.0
        %1916 = vmatmul.mubr.f32.gmra.mxu0 %v699
        %v1917 = vpop.f32.mrf.mxu0
        %v1918 = vadd.f32 %v1213, %v1917
        %v1919 = vpop.f32.mrf.mxu0
        %1920 = vmatprep.mubr.f32.mxu0 0.0
        %1921 = vmatmul.mubr.f32.gmra.mxu0 %v702
        %v1922 = vpop.f32.mrf.mxu0
        %v1923 = vadd.f32 %v1218, %v1922
        %v1924 = vpop.f32.mrf.mxu0
        %1925 = vmatprep.mubr.f32.mxu0 0.0
        %1926 = vmatmul.mubr.f32.gmra.mxu0 %v705
        %v1927 = vpop.f32.mrf.mxu0
        %v1928 = vadd.f32 %v1223, %v1927
        %v1929 = vpop.f32.mrf.mxu0
        %1930 = vmatprep.mubr.f32.mxu0 0.0
        %1931 = vmatmul.mubr.f32.gmra.mxu0 %v708
        %v1932 = vpop.f32.mrf.mxu0
        %v1933 = vadd.f32 %v1228, %v1932
        %v1934 = vpop.f32.mrf.mxu0
        %1935 = vmatprep.mubr.f32.mxu0 0.0
        %1936 = vmatmul.mubr.f32.gmra.mxu0 %v711
        %v1937 = vpop.f32.mrf.mxu0
        %v1938 = vadd.f32 %v1233, %v1937
        %v1939 = vpop.f32.mrf.mxu0
        %1940 = vmatprep.mubr.f32.mxu0 0.0
        %1941 = vmatmul.mubr.f32.gmra.mxu0 %v714
        %v1942 = vpop.f32.mrf.mxu0
        %v1943 = vadd.f32 %v1238, %v1942
        %v1944 = vpop.f32.mrf.mxu0
        %1945 = vmatprep.mubr.f32.mxu0 0.0
        %1946 = vmatmul.mubr.f32.gmra.mxu0 %v717
        %v1947 = vpop.f32.mrf.mxu0
        %v1948 = vadd.f32 %v1243, %v1947
        %v1949 = vpop.f32.mrf.mxu0
        %1950 = vmatprep.mubr.f32.mxu0 0.0
        %1951 = vmatmul.mubr.f32.gmra.mxu0 %v720
        %v1952 = vpop.f32.mrf.mxu0
        %v1953 = vadd.f32 %v1248, %v1952
        %v1954 = vpop.f32.mrf.mxu0
        %1955 = vmatprep.mubr.f32.mxu0 0.0
        %1956 = vmatmul.mubr.f32.gmra.mxu0 %v723
        %v1957 = vpop.f32.mrf.mxu0
        %v1958 = vadd.f32 %v1253, %v1957
        %v1959 = vpop.f32.mrf.mxu0
        %1960 = vmatprep.mubr.f32.mxu0 0.0
        %1961 = vmatmul.mubr.f32.gmra.mxu0 %v726
        %v1962 = vpop.f32.mrf.mxu0
        %v1963 = vadd.f32 %v1258, %v1962
        %v1964 = vpop.f32.mrf.mxu0
        %1965 = vmatprep.mubr.f32.mxu0 0.0
        %1966 = vmatmul.mubr.f32.gmra.mxu0 %v729
        %v1967 = vpop.f32.mrf.mxu0
        %v1968 = vadd.f32 %v1263, %v1967
        %v1969 = vpop.f32.mrf.mxu0
        %1970 = vmatprep.mubr.f32.mxu0 0.0
        %1971 = vmatmul.mubr.f32.gmra.mxu0 %v732
        %v1972 = vpop.f32.mrf.mxu0
        %v1973 = vadd.f32 %v1268, %v1972
        %v1974 = vpop.f32.mrf.mxu0
        %1975 = vmatprep.mubr.f32.mxu0 0.0
        %1976 = vmatmul.mubr.f32.gmra.mxu0 %v735
        %v1977 = vpop.f32.mrf.mxu0
        %v1978 = vadd.f32 %v1273, %v1977
        %v1979 = vpop.f32.mrf.mxu0
        %1980 = vmatprep.mubr.f32.mxu0 0.0
        %1981 = vmatmul.mubr.f32.gmra.mxu0 %v738
        %v1982 = vpop.f32.mrf.mxu0
        %v1983 = vadd.f32 %v1278, %v1982
        %v1984 = vpop.f32.mrf.mxu0
        %1985 = vmatprep.mubr.f32.mxu0 0.0
        %1986 = vmatmul.mubr.f32.gmra.mxu0 %v741
        %v1987 = vpop.f32.mrf.mxu0
        %v1988 = vadd.f32 %v1283, %v1987
        %v1989 = vpop.f32.mrf.mxu0
        %1990 = vmatprep.mubr.f32.mxu0 0.0
        %1991 = vmatmul.mubr.f32.gmra.mxu0 %v744
        %v1992 = vpop.f32.mrf.mxu0
        %v1993 = vadd.f32 %v1288, %v1992
        %v1994 = vpop.f32.mrf.mxu0
        %1995 = vmatprep.mubr.f32.mxu0 0.0
        %1996 = vmatmul.mubr.f32.gmra.mxu0 %v747
        %v1997 = vpop.f32.mrf.mxu0
        %v1998 = vadd.f32 %v1293, %v1997
        %v1999 = vpop.f32.mrf.mxu0
        %2000 = vmatprep.mubr.f32.mxu0 0.0
        %2001 = vmatmul.mubr.f32.gmra.mxu0 %v750
        %v2002 = vpop.f32.mrf.mxu0
        %v2003 = vadd.f32 %v1298, %v2002
        %v2004 = vpop.f32.mrf.mxu0
        %2005 = vmatprep.mubr.f32.mxu0 0.0
        %2006 = vmatmul.mubr.f32.gmra.mxu0 %v753
        %v2007 = vpop.f32.mrf.mxu0
        %v2008 = vadd.f32 %v1303, %v2007
        %v2009 = vpop.f32.mrf.mxu0
        %2010 = vmatprep.mubr.f32.mxu0 0.0
        %2011 = vmatmul.mubr.f32.gmra.mxu0 %v756
        %v2012 = vpop.f32.mrf.mxu0
        %v2013 = vadd.f32 %v1308, %v2012
        %v2014 = vpop.f32.mrf.mxu0
        %2015 = vmatprep.mubr.f32.mxu0 0.0
        %2016 = vmatmul.mubr.f32.gmra.mxu0 %v759
        %v2017 = vpop.f32.mrf.mxu0
        %v2018 = vadd.f32 %v1313, %v2017
        %v2019 = vpop.f32.mrf.mxu0
        %2020 = vmatprep.mubr.f32.mxu0 0.0
        %2021 = vmatmul.mubr.f32.gmra.mxu0 %v762
        %v2022 = vpop.f32.mrf.mxu0
        %v2023 = vadd.f32 %v1318, %v2022
        %v2024 = vpop.f32.mrf.mxu0
        %2025 = vmatprep.mubr.f32.mxu0 0.0
        %2026 = vmatmul.mubr.f32.gmra.mxu0 %v765
        %v2027 = vpop.f32.mrf.mxu0
        %v2028 = vadd.f32 %v1323, %v2027
        %v2029 = vpop.f32.mrf.mxu0
        %2030 = vmatprep.mubr.f32.mxu0 0.0
        %2031 = vmatmul.mubr.f32.gmra.mxu0 %v768
        %v2032 = vpop.f32.mrf.mxu0
        %v2033 = vadd.f32 %v1328, %v2032
        %v2034 = vpop.f32.mrf.mxu0
        %2035 = vmatprep.mubr.f32.mxu0 0.0
        %2036 = vmatmul.mubr.f32.gmra.mxu0 %v771
        %v2037 = vpop.f32.mrf.mxu0
        %v2038 = vadd.f32 %v1333, %v2037
        %v2039 = vpop.f32.mrf.mxu0
        %2040 = vmatprep.mubr.f32.mxu0 0.0
        %2041 = vmatmul.mubr.f32.gmra.mxu0 %v774
        %v2042 = vpop.f32.mrf.mxu0
        %v2043 = vadd.f32 %v1338, %v2042
        %v2044 = vpop.f32.mrf.mxu0
        %2045 = vmatprep.mubr.f32.mxu0 0.0
        %2046 = vmatmul.mubr.f32.gmra.mxu0 %v777
        %v2047 = vpop.f32.mrf.mxu0
        %v2048 = vadd.f32 %v1343, %v2047
        %v2049 = vpop.f32.mrf.mxu0
        %2050 = vmatprep.mubr.f32.mxu0 0.0
        %2051 = vmatmul.mubr.f32.gmra.mxu0 %v780
        %v2052 = vpop.f32.mrf.mxu0
        %v2053 = vadd.f32 %v1348, %v2052
        %v2054 = vpop.f32.mrf.mxu0
        %2055 = vmatprep.mubr.f32.mxu0 0.0
        %2056 = vmatmul.mubr.f32.gmra.mxu0 %v783
        %v2057 = vpop.f32.mrf.mxu0
        %v2058 = vadd.f32 %v1353, %v2057
        %v2059 = vpop.f32.mrf.mxu0
        %2060 = vmatprep.mubr.f32.mxu0 0.0
        %2061 = vmatmul.mubr.f32.gmra.mxu0 %v786
        %v2062 = vpop.f32.mrf.mxu0
        %v2063 = vadd.f32 %v1358, %v2062
        %v2064 = vpop.f32.mrf.mxu0
        %2065 = vmatprep.mubr.f32.mxu0 0.0
        %2066 = vmatmul.mubr.f32.gmra.mxu0 %v789
        %v2067 = vpop.f32.mrf.mxu0
        %v2068 = vadd.f32 %v1363, %v2067
        %v2069 = vpop.f32.mrf.mxu0
        %2070 = vmatprep.mubr.f32.mxu0 0.0
        %2071 = vmatmul.mubr.f32.gmra.mxu0 %v792
        %v2072 = vpop.f32.mrf.mxu0
        %v2073 = vadd.f32 %v1368, %v2072
        %v2074 = vpop.f32.mrf.mxu0
        %2075 = vmatprep.mubr.f32.mxu0 0.0
        %2076 = vmatmul.mubr.f32.gmra.mxu0 %v795
        %v2077 = vpop.f32.mrf.mxu0
        %v2078 = vadd.f32 %v1373, %v2077
        %v2079 = vpop.f32.mrf.mxu0
        %2080 = vmatprep.mubr.f32.mxu0 0.0
        %2081 = vmatmul.mubr.f32.gmra.mxu0 %v798
        %v2082 = vpop.f32.mrf.mxu0
        %v2083 = vadd.f32 %v1378, %v2082
        %v2084 = vpop.f32.mrf.mxu0
        %2085 = vmatprep.mubr.f32.mxu0 0.0
        %2086 = vmatmul.mubr.f32.gmra.mxu0 %v801
        %v2087 = vpop.f32.mrf.mxu0
        %v2088 = vadd.f32 %v1383, %v2087
        %v2089 = vpop.f32.mrf.mxu0
        %2090 = vmatprep.mubr.f32.mxu0 0.0
        %2091 = vmatmul.mubr.f32.gmra.mxu0 %v804
        %v2092 = vpop.f32.mrf.mxu0
        %v2093 = vadd.f32 %v1388, %v2092
        %v2094 = vpop.f32.mrf.mxu0
        %2095 = vmatprep.mubr.f32.mxu0 0.0
        %2096 = vmatmul.mubr.f32.gmra.mxu0 %v807
        %v2097 = vpop.f32.mrf.mxu0
        %v2098 = vadd.f32 %v1393, %v2097
        %v2099 = vpop.f32.mrf.mxu0
        %2100 = vmatprep.mubr.f32.mxu0 0.0
        %2101 = vmatmul.mubr.f32.gmra.mxu0 %v810
        %v2102 = vpop.f32.mrf.mxu0
        %v2103 = vadd.f32 %v1398, %v2102
        %v2104 = vpop.f32.mrf.mxu0
        %2105 = vmatprep.mubr.f32.mxu0 0.0
        %2106 = vmatmul.mubr.f32.gmra.mxu0 %v813
        %v2107 = vpop.f32.mrf.mxu0
        %v2108 = vadd.f32 %v1403, %v2107
        %v2109 = vpop.f32.mrf.mxu0
        %2110 = vmatprep.mubr.f32.mxu0 0.0
        %2111 = vmatmul.mubr.f32.gmra.mxu0 %v816
        %v2112 = vpop.f32.mrf.mxu0
        %v2113 = vadd.f32 %v1408, %v2112
        %v2114 = vpop.f32.mrf.mxu0
        %2115 = vmatprep.mubr.f32.mxu0 0.0
        %2116 = vmatmul.mubr.f32.gmra.mxu0 %v819
        %v2117 = vpop.f32.mrf.mxu0
        %v2118 = vadd.f32 %v1413, %v2117
        %v2119 = vpop.f32.mrf.mxu0
        %2120 = vmatprep.mubr.f32.mxu0 0.0
        %2121 = vmatmul.mubr.f32.gmra.mxu0 %v822
        %v2122 = vpop.f32.mrf.mxu0
        %v2123 = vadd.f32 %v1418, %v2122
        %v2124 = vpop.f32.mrf.mxu0
        %2125 = vmatprep.mubr.f32.mxu0 0.0
        %2126 = vmatmul.mubr.f32.gmra.mxu0 %v825
        %v2127 = vpop.f32.mrf.mxu0
        %v2128 = vadd.f32 %v1423, %v2127
        %v2129 = vpop.f32.mrf.mxu0
        %2130 = vmatprep.mubr.f32.mxu0 0.0
        %2131 = vmatmul.mubr.f32.gmra.mxu0 %v828
        %v2132 = vpop.f32.mrf.mxu0
        %v2133 = vadd.f32 %v1428, %v2132
        %v2134 = vpop.f32.mrf.mxu0
        %2135 = vmatprep.mubr.f32.mxu0 0.0
        %2136 = vmatmul.mubr.f32.gmra.mxu0 %v831
        %v2137 = vpop.f32.mrf.mxu0
        %v2138 = vadd.f32 %v1433, %v2137
        %v2139 = vpop.f32.mrf.mxu0
        %2140 = vmatprep.mubr.f32.mxu0 0.0
        %2141 = vmatmul.mubr.f32.gmra.mxu0 %v834
        %v2142 = vpop.f32.mrf.mxu0
        %v2143 = vadd.f32 %v1438, %v2142
        %v2144 = vpop.f32.mrf.mxu0
        %2145 = vmatprep.mubr.f32.mxu0 0.0
        %2146 = vmatmul.mubr.f32.gmra.mxu0 %v837
        %v2147 = vpop.f32.mrf.mxu0
        %v2148 = vadd.f32 %v1443, %v2147
        %v2149 = vpop.f32.mrf.mxu0
        %2150 = vmatprep.mubr.f32.mxu0 0.0
        %2151 = vmatmul.mubr.f32.gmra.mxu0 %v840
        %v2152 = vpop.f32.mrf.mxu0
        %v2153 = vadd.f32 %v1448, %v2152
        %v2154 = vpop.f32.mrf.mxu0
        %2155 = vmatprep.mubr.f32.mxu0 0.0
        %2156 = vmatmul.mubr.f32.gmra.mxu0 %v843
        %v2157 = vpop.f32.mrf.mxu0
        %v2158 = vadd.f32 %v1453, %v2157
        %v2159 = vpop.f32.mrf.mxu0
        %2160 = vmatprep.mubr.f32.mxu0 0.0
        %2161 = vmatmul.mubr.f32.gmra.mxu0 %v846
        %v2162 = vpop.f32.mrf.mxu0
        %v2163 = vadd.f32 %v1458, %v2162
        %v2164 = vpop.f32.mrf.mxu0
        %2165 = vmatprep.mubr.f32.mxu0 0.0
        %2166 = vmatmul.mubr.f32.gmra.mxu0 %v849
        %v2167 = vpop.f32.mrf.mxu0
        %v2168 = vadd.f32 %v1463, %v2167
        %v2169 = vpop.f32.mrf.mxu0
        %2170 = vmatprep.mubr.f32.mxu0 0.0
        %2171 = vmatmul.mubr.f32.gmra.mxu0 %v852
        %v2172 = vpop.f32.mrf.mxu0
        %v2173 = vadd.f32 %v1468, %v2172
        %v2174 = vpop.f32.mrf.mxu0
        %2175 = vmatprep.mubr.f32.mxu0 0.0
        %2176 = vmatmul.mubr.f32.gmra.mxu0 %v855
        %v2177 = vpop.f32.mrf.mxu0
        %v2178 = vadd.f32 %v1473, %v2177
        %v2179 = vpop.f32.mrf.mxu0
        %2180 = vmatprep.mubr.f32.mxu0 0.0
        %2181 = vmatmul.mubr.f32.gmra.mxu0 %v858
        %v2182 = vpop.f32.mrf.mxu0
        %v2183 = vadd.f32 %v1478, %v2182
        %v2184 = vpop.f32.mrf.mxu0
        %2185 = vmatprep.mubr.f32.mxu0 0.0
        %2186 = vmatmul.mubr.f32.gmra.mxu0 %v861
        %v2187 = vpop.f32.mrf.mxu0
        %v2188 = vadd.f32 %v1483, %v2187
        %v2189 = vpop.f32.mrf.mxu0
        %2190 = vmatprep.mubr.f32.mxu0 0.0
        %2191 = vmatmul.mubr.f32.gmra.mxu0 %v864
        %v2192 = vpop.f32.mrf.mxu0
        %v2193 = vadd.f32 %v1488, %v2192
        %v2194 = vpop.f32.mrf.mxu0
        %2195 = vmatprep.mubr.f32.mxu0 0.0
        %2196 = vmatmul.mubr.f32.gmra.mxu0 %v867
        %v2197 = vpop.f32.mrf.mxu0
        %v2198 = vadd.f32 %v1493, %v2197
        %v2199 = vpop.f32.mrf.mxu0
        %2200 = vmatprep.mubr.f32.mxu0 0.0
        %2201 = vmatmul.mubr.f32.gmra.mxu0 %v870
        %v2202 = vpop.f32.mrf.mxu0
        %v2203 = vadd.f32 %v1498, %v2202
        %v2204 = vpop.f32.mrf.mxu0
        %2205 = vmatprep.mubr.f32.mxu0 0.0
        %2206 = vmatmul.mubr.f32.gmra.mxu0 %v873
        %v2207 = vpop.f32.mrf.mxu0
        %v2208 = vadd.f32 %v1503, %v2207
        %v2209 = vpop.f32.mrf.mxu0
        %2210 = vmatprep.mubr.f32.mxu0 0.0
        %2211 = vmatmul.mubr.f32.gmra.mxu0 %v876
        %v2212 = vpop.f32.mrf.mxu0
        %v2213 = vadd.f32 %v1508, %v2212
        %v2214 = vpop.f32.mrf.mxu0
        %2215 = vmatprep.mubr.f32.mxu0 0.0
        %2216 = vmatmul.mubr.f32.gmra.mxu0 %v879
        %v2217 = vpop.f32.mrf.mxu0
        %v2218 = vadd.f32 %v1513, %v2217
        %v2219 = vpop.f32.mrf.mxu0
        %2220 = vmatprep.mubr.f32.mxu0 0.0
        %2221 = vmatmul.mubr.f32.gmra.mxu0 %v882
        %v2222 = vpop.f32.mrf.mxu0
        %v2223 = vadd.f32 %v1518, %v2222
        %v2224 = vpop.f32.mrf.mxu0
        %2225 = vmatprep.mubr.f32.mxu0 0.0
        %2226 = vmatmul.mubr.f32.gmra.mxu0 %v885
        %v2227 = vpop.f32.mrf.mxu0
        %v2228 = vadd.f32 %v1523, %v2227
        %v2229 = vpop.f32.mrf.mxu0
        %2230 = vmatprep.mubr.f32.mxu0 0.0
        %2231 = vmatmul.mubr.f32.gmra.mxu0 %v888
        %v2232 = vpop.f32.mrf.mxu0
        %v2233 = vadd.f32 %v1528, %v2232
        %v2234 = vpop.f32.mrf.mxu0
        %2235 = vmatprep.mubr.f32.mxu0 0.0
        %2236 = vmatmul.mubr.f32.gmra.mxu0 %v891
        %v2237 = vpop.f32.mrf.mxu0
        %v2238 = vadd.f32 %v1533, %v2237
        %v2239 = vpop.f32.mrf.mxu0
        %2240 = vmatprep.mubr.f32.mxu0 0.0
        %2241 = vmatmul.mubr.f32.gmra.mxu0 %v894
        %v2242 = vpop.f32.mrf.mxu0
        %v2243 = vadd.f32 %v1538, %v2242
        %v2244 = vpop.f32.mrf.mxu0
        %2245 = vmatprep.mubr.f32.mxu0 0.0
        %2246 = vmatmul.mubr.f32.gmra.mxu0 %v897
        %v2247 = vpop.f32.mrf.mxu0
        %v2248 = vadd.f32 %v1543, %v2247
        %v2249 = vpop.f32.mrf.mxu0
        %2250 = vmatprep.mubr.f32.mxu0 0.0
        %2251 = vmatmul.mubr.f32.gmra.mxu0 %v900
        %v2252 = vpop.f32.mrf.mxu0
        %v2253 = vadd.f32 %v1548, %v2252
        %v2254 = vpop.f32.mrf.mxu0
        %2255 = vmatprep.mubr.f32.mxu0 0.0
        %2256 = vmatmul.mubr.f32.gmra.mxu0 %v903
        %v2257 = vpop.f32.mrf.mxu0
        %v2258 = vadd.f32 %v1553, %v2257
        %v2259 = vpop.f32.mrf.mxu0
        %2260 = vmatprep.mubr.f32.mxu0 0.0
        %2261 = vmatmul.mubr.f32.gmra.mxu0 %v906
        %v2262 = vpop.f32.mrf.mxu0
        %v2263 = vadd.f32 %v1558, %v2262
        %v2264 = vpop.f32.mrf.mxu0
        %2265 = vmatprep.mubr.f32.mxu0 0.0
        %2266 = vmatmul.mubr.f32.gmra.mxu0 %v909
        %v2267 = vpop.f32.mrf.mxu0
        %v2268 = vadd.f32 %v1563, %v2267
        %v2269 = vpop.f32.mrf.mxu0
        %2270 = vmatprep.mubr.f32.mxu0 0.0
        %2271 = vmatmul.mubr.f32.gmra.mxu0 %v912
        %v2272 = vpop.f32.mrf.mxu0
        %v2273 = vadd.f32 %v1568, %v2272
        %v2274 = vpop.f32.mrf.mxu0
        %2275 = vmatprep.mubr.f32.mxu0 0.0
        %2276 = vmatmul.mubr.f32.gmra.mxu0 %v915
        %v2277 = vpop.f32.mrf.mxu0
        %v2278 = vadd.f32 %v1573, %v2277
        %v2279 = vpop.f32.mrf.mxu0
        %2280 = vmatprep.mubr.f32.mxu0 0.0
        %2281 = vmatmul.mubr.f32.gmra.mxu0 %v918
        %v2282 = vpop.f32.mrf.mxu0
        %v2283 = vadd.f32 %v1578, %v2282
        %v2284 = vpop.f32.mrf.mxu0
        %2285 = vmatprep.mubr.f32.mxu0 0.0
        %2286 = vmatmul.mubr.f32.gmra.mxu0 %v921
        %v2287 = vpop.f32.mrf.mxu0
        %v2288 = vadd.f32 %v1583, %v2287
        %v2289 = vpop.f32.mrf.mxu0
        %2290 = vmatprep.mubr.f32.mxu0 0.0
        %2291 = vmatmul.mubr.f32.gmra.mxu0 %v924
        %v2292 = vpop.f32.mrf.mxu0
        %v2293 = vadd.f32 %v1588, %v2292
        %v2294 = vpop.f32.mrf.mxu0
        %2295 = vmatprep.mubr.f32.mxu0 0.0
        %2296 = vmatmul.mubr.f32.gmra.mxu0 %v927
        %v2297 = vpop.f32.mrf.mxu0
        %v2298 = vadd.f32 %v1593, %v2297
        %v2299 = vpop.f32.mrf.mxu0
        %2300 = vmatprep.mubr.f32.mxu0 0.0
        %2301 = vmatmul.mubr.f32.gmra.mxu0 %v930
        %v2302 = vpop.f32.mrf.mxu0
        %v2303 = vadd.f32 %v1598, %v2302
        %v2304 = vpop.f32.mrf.mxu0
        %2305 = vmatprep.mubr.f32.mxu0 0.0
        %2306 = vmatmul.mubr.f32.gmra.mxu0 %v933
        %v2307 = vpop.f32.mrf.mxu0
        %v2308 = vadd.f32 %v1603, %v2307
        %v2309 = vpop.f32.mrf.mxu0
        %2310 = vmatprep.mubr.f32.mxu0 0.0
        %2311 = vmatmul.mubr.f32.gmra.mxu0 %v936
        %v2312 = vpop.f32.mrf.mxu0
        %v2313 = vadd.f32 %v1608, %v2312
        %v2314 = vpop.f32.mrf.mxu0
        %2315 = vmatprep.mubr.f32.mxu0 0.0
        %2316 = vmatmul.mubr.f32.gmra.mxu0 %v939
        %v2317 = vpop.f32.mrf.mxu0
        %v2318 = vadd.f32 %v1613, %v2317
        %v2319 = vpop.f32.mrf.mxu0
        %2320 = vmatprep.mubr.f32.mxu0 0.0
        %2321 = vmatmul.mubr.f32.gmra.mxu0 %v942
        %v2322 = vpop.f32.mrf.mxu0
        %v2323 = vadd.f32 %v1618, %v2322
        %v2324 = vpop.f32.mrf.mxu0
        %2325 = vmatprep.mubr.f32.mxu0 0.0
        %2326 = vmatmul.mubr.f32.gmra.mxu0 %v945
        %v2327 = vpop.f32.mrf.mxu0
        %v2328 = vadd.f32 %v1623, %v2327
        %v2329 = vpop.f32.mrf.mxu0
        %2330 = vmatprep.mubr.f32.mxu0 0.0
        %2331 = vmatmul.mubr.f32.gmra.mxu0 %v948
        %v2332 = vpop.f32.mrf.mxu0
        %v2333 = vadd.f32 %v1628, %v2332
        %v2334 = vpop.f32.mrf.mxu0
        %2335 = vmatprep.mubr.f32.mxu0 0.0
        %2336 = vmatmul.mubr.f32.gmra.mxu0 %v951
        %v2337 = vpop.f32.mrf.mxu0
        %v2338 = vadd.f32 %v1633, %v2337
        %v2339 = vpop.f32.mrf.mxu0
        %2340 = vmatprep.mubr.f32.mxu0 0.0
        %2341 = vmatmul.mubr.f32.gmra.mxu0 %v954
        %v2342 = vpop.f32.mrf.mxu0
        %v2343 = vadd.f32 %v1638, %v2342
        %v2344 = vpop.f32.mrf.mxu0
        %2345 = vmatprep.mubr.f32.mxu0 0.0
        %2346 = vmatmul.mubr.f32.gmra.mxu0 %v957
        %v2347 = vpop.f32.mrf.mxu0
        %v2348 = vadd.f32 %v1643, %v2347
        %v2349 = vpop.f32.mrf.mxu0
        %2350 = vmatprep.mubr.f32.mxu0 0.0
        %2351 = vmatmul.mubr.f32.gmra.mxu0 %v960
        %v2352 = vpop.f32.mrf.mxu0
        %v2353 = vadd.f32 %v1648, %v2352
        %v2354 = vpop.f32.mrf.mxu0
        %2355 = vmatprep.mubr.f32.mxu0 0.0
        %2356 = vmatmul.mubr.f32.gmra.mxu0 %v963
        %v2357 = vpop.f32.mrf.mxu0
        %v2358 = vadd.f32 %v1653, %v2357
        %v2359 = vpop.f32.mrf.mxu0
        %2360 = vmatprep.mubr.f32.mxu0 0.0
        %2361 = vmatmul.mubr.f32.gmra.mxu0 %v966
        %v2362 = vpop.f32.mrf.mxu0
        %v2363 = vadd.f32 %v1658, %v2362
        %v2364 = vpop.f32.mrf.mxu0
        %2365 = vmatprep.mubr.f32.mxu0 0.0
        %2366 = vmatmul.mubr.f32.gmra.mxu0 %v969
        %v2367 = vpop.f32.mrf.mxu0
        %v2368 = vadd.f32 %v1663, %v2367
        %v2369 = vpop.f32.mrf.mxu0
        %2370 = vmatprep.mubr.f32.mxu0 0.0
        %2371 = vmatmul.mubr.f32.gmra.mxu0 %v972
        %v2372 = vpop.f32.mrf.mxu0
        %v2373 = vadd.f32 %v1668, %v2372
        %v2374 = vpop.f32.mrf.mxu0
        %2375 = vmatprep.mubr.f32.mxu0 0.0
        %2376 = vmatmul.mubr.f32.gmra.mxu0 %v975
        %v2377 = vpop.f32.mrf.mxu0
        %v2378 = vadd.f32 %v1673, %v2377
        %v2379 = vpop.f32.mrf.mxu0
        %2380 = vmatprep.mubr.f32.mxu0 0.0
        %2381 = vmatmul.mubr.f32.gmra.mxu0 %v978
        %v2382 = vpop.f32.mrf.mxu0
        %v2383 = vadd.f32 %v1678, %v2382
        %v2384 = vpop.f32.mrf.mxu0
        %2385 = vmatprep.mubr.f32.mxu0 0.0
        %2386 = vmatmul.mubr.f32.gmra.mxu0 %v981
        %v2387 = vpop.f32.mrf.mxu0
        %v2388 = vadd.f32 %v1683, %v2387
        %v2389 = vpop.f32.mrf.mxu0
        %2390 = vmatprep.mubr.f32.mxu0 0.0
        %2391 = vmatmul.mubr.f32.gmra.mxu0 %v984
        %v2392 = vpop.f32.mrf.mxu0
        %v2393 = vadd.f32 %v1688, %v2392
        %v2394 = vpop.f32.mrf.mxu0
        %2395 = vmatprep.mubr.f32.mxu0 0.0
        %2396 = vmatmul.mubr.f32.gmra.mxu0 %v987
        %v2397 = vpop.f32.mrf.mxu0
        %v2398 = vadd.f32 %v1693, %v2397
        %v2399 = vpop.f32.mrf.mxu0
        %2400 = vmatprep.mubr.f32.mxu0 0.0
        %2401 = vmatmul.mubr.f32.gmra.mxu0 %v990
        %v2402 = vpop.f32.mrf.mxu0
        %v2403 = vadd.f32 %v1698, %v2402
        %v2404 = vpop.f32.mrf.mxu0
        %2405 = vdwg.mxu0
        %vm2406 = vcmp.ge.f32.partialorder %v1768, 0.0
        %vm2407 = vcmp.ge.f32.partialorder %v1773, 0.0
        %vm2408 = vcmp.ge.f32.partialorder %v1778, 0.0
        %vm2409 = vcmp.ge.f32.partialorder %v1783, 0.0
        %vm2410 = vcmp.ge.f32.partialorder %v1788, 0.0
        %vm2411 = vcmp.ge.f32.partialorder %v1793, 0.0
        %vm2412 = vcmp.ge.f32.partialorder %v1798, 0.0
        %vm2413 = vcmp.ge.f32.partialorder %v1803, 0.0
        %vm2414 = vcmp.ge.f32.partialorder %v1808, 0.0
        %vm2415 = vcmp.ge.f32.partialorder %v1813, 0.0
        %vm2416 = vcmp.ge.f32.partialorder %v1818, 0.0
        %vm2417 = vcmp.ge.f32.partialorder %v1823, 0.0
        %vm2418 = vcmp.ge.f32.partialorder %v1828, 0.0
        %vm2419 = vcmp.ge.f32.partialorder %v1833, 0.0
        %vm2420 = vcmp.ge.f32.partialorder %v1838, 0.0
        %vm2421 = vcmp.ge.f32.partialorder %v1843, 0.0
        %vm2422 = vcmp.ge.f32.partialorder %v1848, 0.0
        %vm2423 = vcmp.ge.f32.partialorder %v1853, 0.0
        %vm2424 = vcmp.ge.f32.partialorder %v1858, 0.0
        %vm2425 = vcmp.ge.f32.partialorder %v1863, 0.0
        %vm2426 = vcmp.ge.f32.partialorder %v1868, 0.0
        %vm2427 = vcmp.ge.f32.partialorder %v1873, 0.0
        %vm2428 = vcmp.ge.f32.partialorder %v1878, 0.0
        %vm2429 = vcmp.ge.f32.partialorder %v1883, 0.0
        %vm2430 = vcmp.ge.f32.partialorder %v1888, 0.0
        %vm2431 = vcmp.ge.f32.partialorder %v1893, 0.0
        %vm2432 = vcmp.ge.f32.partialorder %v1898, 0.0
        %vm2433 = vcmp.ge.f32.partialorder %v1903, 0.0
        %vm2434 = vcmp.ge.f32.partialorder %v1908, 0.0
        %vm2435 = vcmp.ge.f32.partialorder %v1913, 0.0
        %vm2436 = vcmp.ge.f32.partialorder %v1918, 0.0
        %vm2437 = vcmp.ge.f32.partialorder %v1923, 0.0
        %vm2438 = vcmp.ge.f32.partialorder %v1928, 0.0
        %vm2439 = vcmp.ge.f32.partialorder %v1933, 0.0
        %vm2440 = vcmp.ge.f32.partialorder %v1938, 0.0
        %vm2441 = vcmp.ge.f32.partialorder %v1943, 0.0
        %vm2442 = vcmp.ge.f32.partialorder %v1948, 0.0
        %vm2443 = vcmp.ge.f32.partialorder %v1953, 0.0
        %vm2444 = vcmp.ge.f32.partialorder %v1958, 0.0
        %vm2445 = vcmp.ge.f32.partialorder %v1963, 0.0
        %vm2446 = vcmp.ge.f32.partialorder %v1968, 0.0
        %vm2447 = vcmp.ge.f32.partialorder %v1973, 0.0
        %vm2448 = vcmp.ge.f32.partialorder %v1978, 0.0
        %vm2449 = vcmp.ge.f32.partialorder %v1983, 0.0
        %vm2450 = vcmp.ge.f32.partialorder %v1988, 0.0
        %vm2451 = vcmp.ge.f32.partialorder %v1993, 0.0
        %vm2452 = vcmp.ge.f32.partialorder %v1998, 0.0
        %vm2453 = vcmp.ge.f32.partialorder %v2003, 0.0
        %vm2454 = vcmp.ge.f32.partialorder %v2008, 0.0
        %vm2455 = vcmp.ge.f32.partialorder %v2013, 0.0
        %vm2456 = vcmp.ge.f32.partialorder %v2018, 0.0
        %vm2457 = vcmp.ge.f32.partialorder %v2023, 0.0
        %vm2458 = vcmp.ge.f32.partialorder %v2028, 0.0
        %vm2459 = vcmp.ge.f32.partialorder %v2033, 0.0
        %vm2460 = vcmp.ge.f32.partialorder %v2038, 0.0
        %vm2461 = vcmp.ge.f32.partialorder %v2043, 0.0
        %vm2462 = vcmp.ge.f32.partialorder %v2048, 0.0
        %vm2463 = vcmp.ge.f32.partialorder %v2053, 0.0
        %vm2464 = vcmp.ge.f32.partialorder %v2058, 0.0
        %vm2465 = vcmp.ge.f32.partialorder %v2063, 0.0
        %vm2466 = vcmp.ge.f32.partialorder %v2068, 0.0
        %vm2467 = vcmp.ge.f32.partialorder %v2073, 0.0
        %vm2468 = vcmp.ge.f32.partialorder %v2078, 0.0
        %vm2469 = vcmp.ge.f32.partialorder %v2083, 0.0
        %vm2470 = vcmp.ge.f32.partialorder %v2088, 0.0
        %vm2471 = vcmp.ge.f32.partialorder %v2093, 0.0
        %vm2472 = vcmp.ge.f32.partialorder %v2098, 0.0
        %vm2473 = vcmp.ge.f32.partialorder %v2103, 0.0
        %vm2474 = vcmp.ge.f32.partialorder %v2108, 0.0
        %vm2475 = vcmp.ge.f32.partialorder %v2113, 0.0
        %vm2476 = vcmp.ge.f32.partialorder %v2118, 0.0
        %vm2477 = vcmp.ge.f32.partialorder %v2123, 0.0
        %vm2478 = vcmp.ge.f32.partialorder %v2128, 0.0
        %vm2479 = vcmp.ge.f32.partialorder %v2133, 0.0
        %vm2480 = vcmp.ge.f32.partialorder %v2138, 0.0
        %vm2481 = vcmp.ge.f32.partialorder %v2143, 0.0
        %vm2482 = vcmp.ge.f32.partialorder %v2148, 0.0
        %vm2483 = vcmp.ge.f32.partialorder %v2153, 0.0
        %vm2484 = vcmp.ge.f32.partialorder %v2158, 0.0
        %vm2485 = vcmp.ge.f32.partialorder %v2163, 0.0
        %vm2486 = vcmp.ge.f32.partialorder %v2168, 0.0
        %vm2487 = vcmp.ge.f32.partialorder %v2173, 0.0
        %vm2488 = vcmp.ge.f32.partialorder %v2178, 0.0
        %vm2489 = vcmp.ge.f32.partialorder %v2183, 0.0
        %vm2490 = vcmp.ge.f32.partialorder %v2188, 0.0
        %vm2491 = vcmp.ge.f32.partialorder %v2193, 0.0
        %vm2492 = vcmp.ge.f32.partialorder %v2198, 0.0
        %vm2493 = vcmp.ge.f32.partialorder %v2203, 0.0
        %vm2494 = vcmp.ge.f32.partialorder %v2208, 0.0
        %vm2495 = vcmp.ge.f32.partialorder %v2213, 0.0
        %vm2496 = vcmp.ge.f32.partialorder %v2218, 0.0
        %vm2497 = vcmp.ge.f32.partialorder %v2223, 0.0
        %vm2498 = vcmp.ge.f32.partialorder %v2228, 0.0
        %vm2499 = vcmp.ge.f32.partialorder %v2233, 0.0
        %vm2500 = vcmp.ge.f32.partialorder %v2238, 0.0
        %vm2501 = vcmp.ge.f32.partialorder %v2243, 0.0
        %vm2502 = vcmp.ge.f32.partialorder %v2248, 0.0
        %vm2503 = vcmp.ge.f32.partialorder %v2253, 0.0
        %vm2504 = vcmp.ge.f32.partialorder %v2258, 0.0
        %vm2505 = vcmp.ge.f32.partialorder %v2263, 0.0
        %vm2506 = vcmp.ge.f32.partialorder %v2268, 0.0
        %vm2507 = vcmp.ge.f32.partialorder %v2273, 0.0
        %vm2508 = vcmp.ge.f32.partialorder %v2278, 0.0
        %vm2509 = vcmp.ge.f32.partialorder %v2283, 0.0
        %vm2510 = vcmp.ge.f32.partialorder %v2288, 0.0
        %vm2511 = vcmp.ge.f32.partialorder %v2293, 0.0
        %vm2512 = vcmp.ge.f32.partialorder %v2298, 0.0
        %vm2513 = vcmp.ge.f32.partialorder %v2303, 0.0
        %vm2514 = vcmp.ge.f32.partialorder %v2308, 0.0
        %vm2515 = vcmp.ge.f32.partialorder %v2313, 0.0
        %vm2516 = vcmp.ge.f32.partialorder %v2318, 0.0
        %vm2517 = vcmp.ge.f32.partialorder %v2323, 0.0
        %vm2518 = vcmp.ge.f32.partialorder %v2328, 0.0
        %vm2519 = vcmp.ge.f32.partialorder %v2333, 0.0
        %vm2520 = vcmp.ge.f32.partialorder %v2338, 0.0
        %vm2521 = vcmp.ge.f32.partialorder %v2343, 0.0
        %vm2522 = vcmp.ge.f32.partialorder %v2348, 0.0
        %vm2523 = vcmp.ge.f32.partialorder %v2353, 0.0
        %vm2524 = vcmp.ge.f32.partialorder %v2358, 0.0
        %vm2525 = vcmp.ge.f32.partialorder %v2363, 0.0
        %vm2526 = vcmp.ge.f32.partialorder %v2368, 0.0
        %vm2527 = vcmp.ge.f32.partialorder %v2373, 0.0
        %vm2528 = vcmp.ge.f32.partialorder %v2378, 0.0
        %vm2529 = vcmp.ge.f32.partialorder %v2383, 0.0
        %vm2530 = vcmp.ge.f32.partialorder %v2388, 0.0
        %vm2531 = vcmp.ge.f32.partialorder %v2393, 0.0
        %vm2532 = vcmp.ge.f32.partialorder %v2398, 0.0
        %vm2533 = vcmp.ge.f32.partialorder %v2403, 0.0
        %v2534 = vmul.f32 %v1768, 0.01
        %v2535 = vmul.f32 %v1773, 0.01
        %v2536 = vmul.f32 %v1778, 0.01
        %v2537 = vmul.f32 %v1783, 0.01
        %v2538 = vmul.f32 %v1788, 0.01
        %v2539 = vmul.f32 %v1793, 0.01
        %v2540 = vmul.f32 %v1798, 0.01
        %v2541 = vmul.f32 %v1803, 0.01
        %v2542 = vmul.f32 %v1808, 0.01
        %v2543 = vmul.f32 %v1813, 0.01
        %v2544 = vmul.f32 %v1818, 0.01
        %v2545 = vmul.f32 %v1823, 0.01
        %v2546 = vmul.f32 %v1828, 0.01
        %v2547 = vmul.f32 %v1833, 0.01
        %v2548 = vmul.f32 %v1838, 0.01
        %v2549 = vmul.f32 %v1843, 0.01
        %v2550 = vmul.f32 %v1848, 0.01
        %v2551 = vmul.f32 %v1853, 0.01
        %v2552 = vmul.f32 %v1858, 0.01
        %v2553 = vmul.f32 %v1863, 0.01
        %v2554 = vmul.f32 %v1868, 0.01
        %v2555 = vmul.f32 %v1873, 0.01
        %v2556 = vmul.f32 %v1878, 0.01
        %v2557 = vmul.f32 %v1883, 0.01
        %v2558 = vmul.f32 %v1888, 0.01
        %v2559 = vmul.f32 %v1893, 0.01
        %v2560 = vmul.f32 %v1898, 0.01
        %v2561 = vmul.f32 %v1903, 0.01
        %v2562 = vmul.f32 %v1908, 0.01
        %v2563 = vmul.f32 %v1913, 0.01
        %v2564 = vmul.f32 %v1918, 0.01
        %v2565 = vmul.f32 %v1923, 0.01
        %v2566 = vmul.f32 %v1928, 0.01
        %v2567 = vmul.f32 %v1933, 0.01
        %v2568 = vmul.f32 %v1938, 0.01
        %v2569 = vmul.f32 %v1943, 0.01
        %v2570 = vmul.f32 %v1948, 0.01
        %v2571 = vmul.f32 %v1953, 0.01
        %v2572 = vmul.f32 %v1958, 0.01
        %v2573 = vmul.f32 %v1963, 0.01
        %v2574 = vmul.f32 %v1968, 0.01
        %v2575 = vmul.f32 %v1973, 0.01
        %v2576 = vmul.f32 %v1978, 0.01
        %v2577 = vmul.f32 %v1983, 0.01
        %v2578 = vmul.f32 %v1988, 0.01
        %v2579 = vmul.f32 %v1993, 0.01
        %v2580 = vmul.f32 %v1998, 0.01
        %v2581 = vmul.f32 %v2003, 0.01
        %v2582 = vmul.f32 %v2008, 0.01
        %v2583 = vmul.f32 %v2013, 0.01
        %v2584 = vmul.f32 %v2018, 0.01
        %v2585 = vmul.f32 %v2023, 0.01
        %v2586 = vmul.f32 %v2028, 0.01
        %v2587 = vmul.f32 %v2033, 0.01
        %v2588 = vmul.f32 %v2038, 0.01
        %v2589 = vmul.f32 %v2043, 0.01
        %v2590 = vmul.f32 %v2048, 0.01
        %v2591 = vmul.f32 %v2053, 0.01
        %v2592 = vmul.f32 %v2058, 0.01
        %v2593 = vmul.f32 %v2063, 0.01
        %v2594 = vmul.f32 %v2068, 0.01
        %v2595 = vmul.f32 %v2073, 0.01
        %v2596 = vmul.f32 %v2078, 0.01
        %v2597 = vmul.f32 %v2083, 0.01
        %v2598 = vmul.f32 %v2088, 0.01
        %v2599 = vmul.f32 %v2093, 0.01
        %v2600 = vmul.f32 %v2098, 0.01
        %v2601 = vmul.f32 %v2103, 0.01
        %v2602 = vmul.f32 %v2108, 0.01
        %v2603 = vmul.f32 %v2113, 0.01
        %v2604 = vmul.f32 %v2118, 0.01
        %v2605 = vmul.f32 %v2123, 0.01
        %v2606 = vmul.f32 %v2128, 0.01
        %v2607 = vmul.f32 %v2133, 0.01
        %v2608 = vmul.f32 %v2138, 0.01
        %v2609 = vmul.f32 %v2143, 0.01
        %v2610 = vmul.f32 %v2148, 0.01
        %v2611 = vmul.f32 %v2153, 0.01
        %v2612 = vmul.f32 %v2158, 0.01
        %v2613 = vmul.f32 %v2163, 0.01
        %v2614 = vmul.f32 %v2168, 0.01
        %v2615 = vmul.f32 %v2173, 0.01
        %v2616 = vmul.f32 %v2178, 0.01
        %v2617 = vmul.f32 %v2183, 0.01
        %v2618 = vmul.f32 %v2188, 0.01
        %v2619 = vmul.f32 %v2193, 0.01
        %v2620 = vmul.f32 %v2198, 0.01
        %v2621 = vmul.f32 %v2203, 0.01
        %v2622 = vmul.f32 %v2208, 0.01
        %v2623 = vmul.f32 %v2213, 0.01
        %v2624 = vmul.f32 %v2218, 0.01
        %v2625 = vmul.f32 %v2223, 0.01
        %v2626 = vmul.f32 %v2228, 0.01
        %v2627 = vmul.f32 %v2233, 0.01
        %v2628 = vmul.f32 %v2238, 0.01
        %v2629 = vmul.f32 %v2243, 0.01
        %v2630 = vmul.f32 %v2248, 0.01
        %v2631 = vmul.f32 %v2253, 0.01
        %v2632 = vmul.f32 %v2258, 0.01
        %v2633 = vmul.f32 %v2263, 0.01
        %v2634 = vmul.f32 %v2268, 0.01
        %v2635 = vmul.f32 %v2273, 0.01
        %v2636 = vmul.f32 %v2278, 0.01
        %v2637 = vmul.f32 %v2283, 0.01
        %v2638 = vmul.f32 %v2288, 0.01
        %v2639 = vmul.f32 %v2293, 0.01
        %v2640 = vmul.f32 %v2298, 0.01
        %v2641 = vmul.f32 %v2303, 0.01
        %v2642 = vmul.f32 %v2308, 0.01
        %v2643 = vmul.f32 %v2313, 0.01
        %v2644 = vmul.f32 %v2318, 0.01
        %v2645 = vmul.f32 %v2323, 0.01
        %v2646 = vmul.f32 %v2328, 0.01
        %v2647 = vmul.f32 %v2333, 0.01
        %v2648 = vmul.f32 %v2338, 0.01
        %v2649 = vmul.f32 %v2343, 0.01
        %v2650 = vmul.f32 %v2348, 0.01
        %v2651 = vmul.f32 %v2353, 0.01
        %v2652 = vmul.f32 %v2358, 0.01
        %v2653 = vmul.f32 %v2363, 0.01
        %v2654 = vmul.f32 %v2368, 0.01
        %v2655 = vmul.f32 %v2373, 0.01
        %v2656 = vmul.f32 %v2378, 0.01
        %v2657 = vmul.f32 %v2383, 0.01
        %v2658 = vmul.f32 %v2388, 0.01
        %v2659 = vmul.f32 %v2393, 0.01
        %v2660 = vmul.f32 %v2398, 0.01
        %v2661 = vmul.f32 %v2403, 0.01
        %v2662 = vsel %vm2406, %v1768, %v2534
        %v2663 = vsel %vm2407, %v1773, %v2535
        %v2664 = vsel %vm2408, %v1778, %v2536
        %v2665 = vsel %vm2409, %v1783, %v2537
        %v2666 = vsel %vm2410, %v1788, %v2538
        %v2667 = vsel %vm2411, %v1793, %v2539
        %v2668 = vsel %vm2412, %v1798, %v2540
        %v2669 = vsel %vm2413, %v1803, %v2541
        %v2670 = vsel %vm2414, %v1808, %v2542
        %v2671 = vsel %vm2415, %v1813, %v2543
        %v2672 = vsel %vm2416, %v1818, %v2544
        %v2673 = vsel %vm2417, %v1823, %v2545
        %v2674 = vsel %vm2418, %v1828, %v2546
        %v2675 = vsel %vm2419, %v1833, %v2547
        %v2676 = vsel %vm2420, %v1838, %v2548
        %v2677 = vsel %vm2421, %v1843, %v2549
        %v2678 = vsel %vm2422, %v1848, %v2550
        %v2679 = vsel %vm2423, %v1853, %v2551
        %v2680 = vsel %vm2424, %v1858, %v2552
        %v2681 = vsel %vm2425, %v1863, %v2553
        %v2682 = vsel %vm2426, %v1868, %v2554
        %v2683 = vsel %vm2427, %v1873, %v2555
        %v2684 = vsel %vm2428, %v1878, %v2556
        %v2685 = vsel %vm2429, %v1883, %v2557
        %v2686 = vsel %vm2430, %v1888, %v2558
        %v2687 = vsel %vm2431, %v1893, %v2559
        %v2688 = vsel %vm2432, %v1898, %v2560
        %v2689 = vsel %vm2433, %v1903, %v2561
        %v2690 = vsel %vm2434, %v1908, %v2562
        %v2691 = vsel %vm2435, %v1913, %v2563
        %v2692 = vsel %vm2436, %v1918, %v2564
        %v2693 = vsel %vm2437, %v1923, %v2565
        %v2694 = vsel %vm2438, %v1928, %v2566
        %v2695 = vsel %vm2439, %v1933, %v2567
        %v2696 = vsel %vm2440, %v1938, %v2568
        %v2697 = vsel %vm2441, %v1943, %v2569
        %v2698 = vsel %vm2442, %v1948, %v2570
        %v2699 = vsel %vm2443, %v1953, %v2571
        %v2700 = vsel %vm2444, %v1958, %v2572
        %v2701 = vsel %vm2445, %v1963, %v2573
        %v2702 = vsel %vm2446, %v1968, %v2574
        %v2703 = vsel %vm2447, %v1973, %v2575
        %v2704 = vsel %vm2448, %v1978, %v2576
        %v2705 = vsel %vm2449, %v1983, %v2577
        %v2706 = vsel %vm2450, %v1988, %v2578
        %v2707 = vsel %vm2451, %v1993, %v2579
        %v2708 = vsel %vm2452, %v1998, %v2580
        %v2709 = vsel %vm2453, %v2003, %v2581
        %v2710 = vsel %vm2454, %v2008, %v2582
        %v2711 = vsel %vm2455, %v2013, %v2583
        %v2712 = vsel %vm2456, %v2018, %v2584
        %v2713 = vsel %vm2457, %v2023, %v2585
        %v2714 = vsel %vm2458, %v2028, %v2586
        %v2715 = vsel %vm2459, %v2033, %v2587
        %v2716 = vsel %vm2460, %v2038, %v2588
        %v2717 = vsel %vm2461, %v2043, %v2589
        %v2718 = vsel %vm2462, %v2048, %v2590
        %v2719 = vsel %vm2463, %v2053, %v2591
        %v2720 = vsel %vm2464, %v2058, %v2592
        %v2721 = vsel %vm2465, %v2063, %v2593
        %v2722 = vsel %vm2466, %v2068, %v2594
        %v2723 = vsel %vm2467, %v2073, %v2595
        %v2724 = vsel %vm2468, %v2078, %v2596
        %v2725 = vsel %vm2469, %v2083, %v2597
        %v2726 = vsel %vm2470, %v2088, %v2598
        %v2727 = vsel %vm2471, %v2093, %v2599
        %v2728 = vsel %vm2472, %v2098, %v2600
        %v2729 = vsel %vm2473, %v2103, %v2601
        %v2730 = vsel %vm2474, %v2108, %v2602
        %v2731 = vsel %vm2475, %v2113, %v2603
        %v2732 = vsel %vm2476, %v2118, %v2604
        %v2733 = vsel %vm2477, %v2123, %v2605
        %v2734 = vsel %vm2478, %v2128, %v2606
        %v2735 = vsel %vm2479, %v2133, %v2607
        %v2736 = vsel %vm2480, %v2138, %v2608
        %v2737 = vsel %vm2481, %v2143, %v2609
        %v2738 = vsel %vm2482, %v2148, %v2610
        %v2739 = vsel %vm2483, %v2153, %v2611
        %v2740 = vsel %vm2484, %v2158, %v2612
        %v2741 = vsel %vm2485, %v2163, %v2613
        %v2742 = vsel %vm2486, %v2168, %v2614
        %v2743 = vsel %vm2487, %v2173, %v2615
        %v2744 = vsel %vm2488, %v2178, %v2616
        %v2745 = vsel %vm2489, %v2183, %v2617
        %v2746 = vsel %vm2490, %v2188, %v2618
        %v2747 = vsel %vm2491, %v2193, %v2619
        %v2748 = vsel %vm2492, %v2198, %v2620
        %v2749 = vsel %vm2493, %v2203, %v2621
        %v2750 = vsel %vm2494, %v2208, %v2622
        %v2751 = vsel %vm2495, %v2213, %v2623
        %v2752 = vsel %vm2496, %v2218, %v2624
        %v2753 = vsel %vm2497, %v2223, %v2625
        %v2754 = vsel %vm2498, %v2228, %v2626
        %v2755 = vsel %vm2499, %v2233, %v2627
        %v2756 = vsel %vm2500, %v2238, %v2628
        %v2757 = vsel %vm2501, %v2243, %v2629
        %v2758 = vsel %vm2502, %v2248, %v2630
        %v2759 = vsel %vm2503, %v2253, %v2631
        %v2760 = vsel %vm2504, %v2258, %v2632
        %v2761 = vsel %vm2505, %v2263, %v2633
        %v2762 = vsel %vm2506, %v2268, %v2634
        %v2763 = vsel %vm2507, %v2273, %v2635
        %v2764 = vsel %vm2508, %v2278, %v2636
        %v2765 = vsel %vm2509, %v2283, %v2637
        %v2766 = vsel %vm2510, %v2288, %v2638
        %v2767 = vsel %vm2511, %v2293, %v2639
        %v2768 = vsel %vm2512, %v2298, %v2640
        %v2769 = vsel %vm2513, %v2303, %v2641
        %v2770 = vsel %vm2514, %v2308, %v2642
        %v2771 = vsel %vm2515, %v2313, %v2643
        %v2772 = vsel %vm2516, %v2318, %v2644
        %v2773 = vsel %vm2517, %v2323, %v2645
        %v2774 = vsel %vm2518, %v2328, %v2646
        %v2775 = vsel %vm2519, %v2333, %v2647
        %v2776 = vsel %vm2520, %v2338, %v2648
        %v2777 = vsel %vm2521, %v2343, %v2649
        %v2778 = vsel %vm2522, %v2348, %v2650
        %v2779 = vsel %vm2523, %v2353, %v2651
        %v2780 = vsel %vm2524, %v2358, %v2652
        %v2781 = vsel %vm2525, %v2363, %v2653
        %v2782 = vsel %vm2526, %v2368, %v2654
        %v2783 = vsel %vm2527, %v2373, %v2655
        %v2784 = vsel %vm2528, %v2378, %v2656
        %v2785 = vsel %vm2529, %v2383, %v2657
        %v2786 = vsel %vm2530, %v2388, %v2658
        %v2787 = vsel %vm2531, %v2393, %v2659
        %v2788 = vsel %vm2532, %v2398, %v2660
        %v2789 = vsel %vm2533, %v2403, %v2661
        %2790 = vst [vmem:[%s166] sm:$0xff] %v2662
        %2791 = vst [vmem:[%s166 + $0x8] sm:$0xff] %v2663
        %2792 = vst [vmem:[%s166 + $0x10] sm:$0xff] %v2664
        %2793 = vst [vmem:[%s166 + $0x18] sm:$0xff] %v2665
        %2794 = vst [vmem:[%s166 + $0x20] sm:$0xff] %v2666
        %2795 = vst [vmem:[%s166 + $0x28] sm:$0xff] %v2667
        %2796 = vst [vmem:[%s166 + $0x30] sm:$0xff] %v2668
        %2797 = vst [vmem:[%s166 + $0x38] sm:$0xff] %v2669
        %2798 = vst [vmem:[%s166 + $0x40] sm:$0xff] %v2670
        %2799 = vst [vmem:[%s166 + $0x48] sm:$0xff] %v2671
        %2800 = vst [vmem:[%s166 + $0x50] sm:$0xff] %v2672
        %2801 = vst [vmem:[%s166 + $0x58] sm:$0xff] %v2673
        %2802 = vst [vmem:[%s166 + $0x60] sm:$0xff] %v2674
        %2803 = vst [vmem:[%s166 + $0x68] sm:$0xff] %v2675
        %2804 = vst [vmem:[%s166 + $0x70] sm:$0xff] %v2676
        %2805 = vst [vmem:[%s166 + $0x78] sm:$0xff] %v2677
        %2806 = vst [vmem:[%s166 + $0x80] sm:$0xff] %v2678
        %2807 = vst [vmem:[%s166 + $0x88] sm:$0xff] %v2679
        %2808 = vst [vmem:[%s166 + $0x90] sm:$0xff] %v2680
        %2809 = vst [vmem:[%s166 + $0x98] sm:$0xff] %v2681
        %2810 = vst [vmem:[%s166 + $0xa0] sm:$0xff] %v2682
        %2811 = vst [vmem:[%s166 + $0xa8] sm:$0xff] %v2683
        %2812 = vst [vmem:[%s166 + $0xb0] sm:$0xff] %v2684
        %2813 = vst [vmem:[%s166 + $0xb8] sm:$0xff] %v2685
        %2814 = vst [vmem:[%s166 + $0xc0] sm:$0xff] %v2686
        %2815 = vst [vmem:[%s166 + $0xc8] sm:$0xff] %v2687
        %2816 = vst [vmem:[%s166 + $0xd0] sm:$0xff] %v2688
        %2817 = vst [vmem:[%s166 + $0xd8] sm:$0xff] %v2689
        %2818 = vst [vmem:[%s166 + $0xe0] sm:$0xff] %v2690
        %2819 = vst [vmem:[%s166 + $0xe8] sm:$0xff] %v2691
        %2820 = vst [vmem:[%s166 + $0xf0] sm:$0xff] %v2692
        %2821 = vst [vmem:[%s166 + $0xf8] sm:$0xff] %v2693
        %2822 = vst [vmem:[%s166 + $0x100] sm:$0xff] %v2694
        %2823 = vst [vmem:[%s166 + $0x108] sm:$0xff] %v2695
        %2824 = vst [vmem:[%s166 + $0x110] sm:$0xff] %v2696
        %2825 = vst [vmem:[%s166 + $0x118] sm:$0xff] %v2697
        %2826 = vst [vmem:[%s166 + $0x120] sm:$0xff] %v2698
        %2827 = vst [vmem:[%s166 + $0x128] sm:$0xff] %v2699
        %2828 = vst [vmem:[%s166 + $0x130] sm:$0xff] %v2700
        %2829 = vst [vmem:[%s166 + $0x138] sm:$0xff] %v2701
        %2830 = vst [vmem:[%s166 + $0x140] sm:$0xff] %v2702
        %2831 = vst [vmem:[%s166 + $0x148] sm:$0xff] %v2703
        %2832 = vst [vmem:[%s166 + $0x150] sm:$0xff] %v2704
        %2833 = vst [vmem:[%s166 + $0x158] sm:$0xff] %v2705
        %2834 = vst [vmem:[%s166 + $0x160] sm:$0xff] %v2706
        %2835 = vst [vmem:[%s166 + $0x168] sm:$0xff] %v2707
        %2836 = vst [vmem:[%s166 + $0x170] sm:$0xff] %v2708
        %2837 = vst [vmem:[%s166 + $0x178] sm:$0xff] %v2709
        %2838 = vst [vmem:[%s166 + $0x180] sm:$0xff] %v2710
        %2839 = vst [vmem:[%s166 + $0x188] sm:$0xff] %v2711
        %2840 = vst [vmem:[%s166 + $0x190] sm:$0xff] %v2712
        %2841 = vst [vmem:[%s166 + $0x198] sm:$0xff] %v2713
        %2842 = vst [vmem:[%s166 + $0x1a0] sm:$0xff] %v2714
        %2843 = vst [vmem:[%s166 + $0x1a8] sm:$0xff] %v2715
        %2844 = vst [vmem:[%s166 + $0x1b0] sm:$0xff] %v2716
        %2845 = vst [vmem:[%s166 + $0x1b8] sm:$0xff] %v2717
        %2846 = vst [vmem:[%s166 + $0x1c0] sm:$0xff] %v2718
        %2847 = vst [vmem:[%s166 + $0x1c8] sm:$0xff] %v2719
        %2848 = vst [vmem:[%s166 + $0x1d0] sm:$0xff] %v2720
        %2849 = vst [vmem:[%s166 + $0x1d8] sm:$0xff] %v2721
        %2850 = vst [vmem:[%s166 + $0x1e0] sm:$0xff] %v2722
        %2851 = vst [vmem:[%s166 + $0x1e8] sm:$0xff] %v2723
        %2852 = vst [vmem:[%s166 + $0x1f0] sm:$0xff] %v2724
        %2853 = vst [vmem:[%s166 + $0x1f8] sm:$0xff] %v2725
        %2854 = vst [vmem:[%s166 + $0x200] sm:$0xff] %v2726
        %2855 = vst [vmem:[%s166 + $0x208] sm:$0xff] %v2727
        %2856 = vst [vmem:[%s166 + $0x210] sm:$0xff] %v2728
        %2857 = vst [vmem:[%s166 + $0x218] sm:$0xff] %v2729
        %2858 = vst [vmem:[%s166 + $0x220] sm:$0xff] %v2730
        %2859 = vst [vmem:[%s166 + $0x228] sm:$0xff] %v2731
        %2860 = vst [vmem:[%s166 + $0x230] sm:$0xff] %v2732
        %2861 = vst [vmem:[%s166 + $0x238] sm:$0xff] %v2733
        %2862 = vst [vmem:[%s166 + $0x240] sm:$0xff] %v2734
        %2863 = vst [vmem:[%s166 + $0x248] sm:$0xff] %v2735
        %2864 = vst [vmem:[%s166 + $0x250] sm:$0xff] %v2736
        %2865 = vst [vmem:[%s166 + $0x258] sm:$0xff] %v2737
        %2866 = vst [vmem:[%s166 + $0x260] sm:$0xff] %v2738
        %2867 = vst [vmem:[%s166 + $0x268] sm:$0xff] %v2739
        %2868 = vst [vmem:[%s166 + $0x270] sm:$0xff] %v2740
        %2869 = vst [vmem:[%s166 + $0x278] sm:$0xff] %v2741
        %2870 = vst [vmem:[%s166 + $0x280] sm:$0xff] %v2742
        %2871 = vst [vmem:[%s166 + $0x288] sm:$0xff] %v2743
        %2872 = vst [vmem:[%s166 + $0x290] sm:$0xff] %v2744
        %2873 = vst [vmem:[%s166 + $0x298] sm:$0xff] %v2745
        %2874 = vst [vmem:[%s166 + $0x2a0] sm:$0xff] %v2746
        %2875 = vst [vmem:[%s166 + $0x2a8] sm:$0xff] %v2747
        %2876 = vst [vmem:[%s166 + $0x2b0] sm:$0xff] %v2748
        %2877 = vst [vmem:[%s166 + $0x2b8] sm:$0xff] %v2749
        %2878 = vst [vmem:[%s166 + $0x2c0] sm:$0xff] %v2750
        %2879 = vst [vmem:[%s166 + $0x2c8] sm:$0xff] %v2751
        %2880 = vst [vmem:[%s166 + $0x2d0] sm:$0xff] %v2752
        %2881 = vst [vmem:[%s166 + $0x2d8] sm:$0xff] %v2753
        %2882 = vst [vmem:[%s166 + $0x2e0] sm:$0xff] %v2754
        %2883 = vst [vmem:[%s166 + $0x2e8] sm:$0xff] %v2755
        %2884 = vst [vmem:[%s166 + $0x2f0] sm:$0xff] %v2756
        %2885 = vst [vmem:[%s166 + $0x2f8] sm:$0xff] %v2757
        %2886 = vst [vmem:[%s166 + $0x300] sm:$0xff] %v2758
        %2887 = vst [vmem:[%s166 + $0x308] sm:$0xff] %v2759
        %2888 = vst [vmem:[%s166 + $0x310] sm:$0xff] %v2760
        %2889 = vst [vmem:[%s166 + $0x318] sm:$0xff] %v2761
        %2890 = vst [vmem:[%s166 + $0x320] sm:$0xff] %v2762
        %2891 = vst [vmem:[%s166 + $0x328] sm:$0xff] %v2763
        %2892 = vst [vmem:[%s166 + $0x330] sm:$0xff] %v2764
        %2893 = vst [vmem:[%s166 + $0x338] sm:$0xff] %v2765
        %2894 = vst [vmem:[%s166 + $0x340] sm:$0xff] %v2766
        %2895 = vst [vmem:[%s166 + $0x348] sm:$0xff] %v2767
        %2896 = vst [vmem:[%s166 + $0x350] sm:$0xff] %v2768
        %2897 = vst [vmem:[%s166 + $0x358] sm:$0xff] %v2769
        %2898 = vst [vmem:[%s166 + $0x360] sm:$0xff] %v2770
        %2899 = vst [vmem:[%s166 + $0x368] sm:$0xff] %v2771
        %2900 = vst [vmem:[%s166 + $0x370] sm:$0xff] %v2772
        %2901 = vst [vmem:[%s166 + $0x378] sm:$0xff] %v2773
        %2902 = vst [vmem:[%s166 + $0x380] sm:$0xff] %v2774
        %2903 = vst [vmem:[%s166 + $0x388] sm:$0xff] %v2775
        %2904 = vst [vmem:[%s166 + $0x390] sm:$0xff] %v2776
        %2905 = vst [vmem:[%s166 + $0x398] sm:$0xff] %v2777
        %2906 = vst [vmem:[%s166 + $0x3a0] sm:$0xff] %v2778
        %2907 = vst [vmem:[%s166 + $0x3a8] sm:$0xff] %v2779
        %2908 = vst [vmem:[%s166 + $0x3b0] sm:$0xff] %v2780
        %2909 = vst [vmem:[%s166 + $0x3b8] sm:$0xff] %v2781
        %2910 = vst [vmem:[%s166 + $0x3c0] sm:$0xff] %v2782
        %2911 = vst [vmem:[%s166 + $0x3c8] sm:$0xff] %v2783
        %2912 = vst [vmem:[%s166 + $0x3d0] sm:$0xff] %v2784
        %2913 = vst [vmem:[%s166 + $0x3d8] sm:$0xff] %v2785
        %2914 = vst [vmem:[%s166 + $0x3e0] sm:$0xff] %v2786
        %2915 = vst [vmem:[%s166 + $0x3e8] sm:$0xff] %v2787
        %2916 = vst [vmem:[%s166 + $0x3f0] sm:$0xff] %v2788
        %2917 = vst [vmem:[%s166 + $0x3f8] sm:$0xff] %v2789
        %s2918 = sand.u32 %s93, 1
        %s2919 = scalar_lea.sflag [#allocation3], %s2918
        %s2920 = sand.u32 %s93, 1
        %s2921 = smul.addr %s2920, 1024
        %s2922 = scalar_lea.vmem [#allocation2], %s2921
        // Predicated region
        $region33: #{tpu_custom_call.1} parent=31 // pred_check
          %p2923 = pneg %p103
        $region34: #{tpu_custom_call.1} parent=31 // pred_check_branch
          %2925 = sbr.rel (%p2923) target = $region36
        $region35: #{tpu_custom_call.1} parent=31 // pred_region
          %s2926 = smul.u32 128, %s17
          %s2928 = ssub.s32 16384, 16384
          %2929 = vsyncadd %s2919, %s2928
          %s2930 = smul.addr %s2926, 128
          %s2931 = scalar_lea.hbm %s3, %s2930
          %s2932 = sshll.u32 %s2922, 4
          %s2933 = int_to_ptr.vmem [resolvable:$true] %s2932
          %2938 = dma.vmem_to_hbm [thread:$0]  %s2933, 16384, %s2931, %s2919, 128, 128, 8
        $region36: #{tpu_custom_call.1} parent=31 // pred_fallthru
          _
      $region32: #{tpu_custom_call.1} parent=5 // pred_fallthru
        _
      %p2939 = scmp.le.s32.totalorder 2, %s12
      // Predicated region
      $region37: #{tpu_custom_call.1} parent=5 // pred_check
        %p2940 = pneg %p2939
      $region38: #{tpu_custom_call.1} parent=5 // pred_check_branch
        %2942 = sbr.rel (%p2940) target = $region40
      $region39: #{tpu_custom_call.1} parent=5 // pred_region
        %s2943 = ssub.s32 %s12, 2
        // Predicated region
        $region41: #{tpu_custom_call.1} parent=39 // pred_check
          %p2944 = pneg %p109
        $region42: #{tpu_custom_call.1} parent=39 // pred_check_branch
          %2946 = sbr.rel (%p2944) target = $region44
        $region43: #{tpu_custom_call.1} parent=39 // pred_region
          %s2947 = sand.u32 %s94, 1
          %s2948 = scalar_lea.sflag [#allocation3], %s2947
          %s2949 = sand.u32 %s94, 1
          %s2950 = smul.addr %s2949, 1024
          %s2951 = scalar_lea.vmem [#allocation2], %s2950
          %2952 = dma.done %s2948, 16384
        $region44: #{tpu_custom_call.1} parent=39 // pred_fallthru
          _
      $region40: #{tpu_custom_call.1} parent=5 // pred_fallthru
        _
    $region6: #{tpu_custom_call.1} parent=1 // loop_footer
      %s16 = sadd.s32 1, %s12
    $region7: #{tpu_custom_call.1} parent=1 // loop_footer_branch
      %11 = sbr.rel target = $region3
    $region8: #{tpu_custom_call.1} parent=1 // loop_exit
      _
    %2953 = vsyncpa [#allocation3], 1
    %s2954 = scalar_lea.sflag [#allocation3], 1
    %2955 = vsyncpa %s2954, 1

</llo_original>
